<compile_context>
chip_gen: v5e
topology: v5e:2x2
jax: 0.10.0
libtpu: 0.0.40
codegen_flags: <defaults>
</compile_context>

<pallas_src>
import math

import jax
import jax.numpy as jnp
from jax.experimental import pallas as pl
from jax.experimental.pallas import tpu as pltpu


def lstm_model_kernel(x_ref, w1t_ref, b1_ref, wigo_ref, bgo_ref,
                      w2t_ref, b2_ref, o_ref):
    eps = 1e-6
    x = x_ref[...].astype(jnp.float32)          # f32 or bf16 input, upcast in-reg

    # torch.clamp(x, 1e-6, 1-1e-6); torch.log(x / (1 - x))
    # divide -> EUP approx reciprocal (free slot vs. multi-op f32 divide)
    x = jnp.clip(x, eps, 1.0 - eps)
    x = jnp.log(x * pl.reciprocal(1.0 - x, approx=True))

    # fc1 + ReLU   (bf16 MXU matmul, f32 accumulate)
    h1 = jnp.dot(x.astype(jnp.bfloat16), w1t_ref[...],
                 preferred_element_type=jnp.float32) + b1_ref[...]
    h1 = jnp.maximum(h1, 0.0)

    # Single LSTM step from zero initial state; forget gate already removed,
    # biases pre-summed.  Gate column order here is (i, g, o).
    gates = jnp.dot(h1.astype(jnp.bfloat16), wigo_ref[...],
                    preferred_element_type=jnp.float32) + bgo_ref[...]
    hid = h1.shape[-1]
    i_g = jax.nn.sigmoid(gates[:, 0 * hid:1 * hid])
    g_g = jnp.tanh(gates[:, 1 * hid:2 * hid])
    o_g = jax.nn.sigmoid(gates[:, 2 * hid:3 * hid])
    c = i_g * g_g
    h = o_g * jnp.tanh(c)

    # fc2 + sigmoid (output lanes padded to 128 for unmasked vector stores)
    out = jnp.dot(h.astype(jnp.bfloat16), w2t_ref[...],
                  preferred_element_type=jnp.float32) + b2_ref[...]
    o_ref[...] = jax.nn.sigmoid(out).astype(o_ref.dtype)


def pack_params(torch_params, out_pad=128):
    """Convert PyTorch-layout f32 params into kernel-ready arrays.

    torch_params: (w1 (H,In), b1 (H,), w_ih (4H,H), w_hh (4H,H),
                   b_ih (4H,), b_hh (4H,), w2 (Out,H), b2 (Out,))
    Returns kernel params:
      w1t  bf16 (In, H)        b1k  f32 (1, H)
      wigo bf16 (H, 3H)        bgo  f32 (1, 3H)   # i/g/o only, biases pre-summed
      w2tp bf16 (H, out_pad)   b2p  f32 (1, out_pad)
    """
    w1, b1, w_ih, _w_hh, b_ih, b_hh, w2, b2 = torch_params
    hid = w1.shape[0]
    out_size = w2.shape[0]

    w1t = w1.T.astype(jnp.bfloat16)                          # (In, H)
    b1k = b1.reshape(1, hid).astype(jnp.float32)

    # PyTorch gate row order: i [0:H], f [H:2H], g [2H:3H], o [3H:4H].
    # Drop the dead forget gate, transpose, pre-sum the two biases.
    keep = jnp.concatenate([jnp.arange(0, hid),               # i
                            jnp.arange(2 * hid, 3 * hid),     # g
                            jnp.arange(3 * hid, 4 * hid)])    # o
    wigo = w_ih[keep, :].T.astype(jnp.bfloat16)               # (H, 3H)
    bgo = (b_ih + b_hh)[keep].reshape(1, 3 * hid).astype(jnp.float32)

    # fc2: transpose and zero-pad output lanes to out_pad for lane-dense stores.
    w2tp = jnp.zeros((hid, out_pad), jnp.float32).at[:, :out_size].set(w2.T)
    w2tp = w2tp.astype(jnp.bfloat16)
    b2p = jnp.zeros((1, out_pad), jnp.float32).at[0, :out_size].set(b2)

    return (w1t, b1k, wigo, bgo, w2tp, b2p), out_size


def _num_tensorcores():
    """2 TensorCores per chip on v7x, 1 on v5e/v6e (best-effort detection)."""
    try:
        kind = jax.devices()[0].device_kind.lower()
    except Exception:
        return 1
    return 2 if ("v7" in kind or "7x" in kind) else 1


def lstm_model_forward(x, kernel_params, out_size, *, tile_b=None, tile_b_max=512):
    """x: (B, input_size) float32 (or bf16).  Returns (B, out_size) float32."""
    w1t, b1k, wigo, bgo, w2tp, b2p = kernel_params
    batch, in_size = x.shape
    hid = w1t.shape[1]
    out_pad = w2tp.shape[1]

    # One grid step per TensorCore when the batch fits (v5e/v6e -> 1 step,
    # v7x -> 2 steps); larger batches stream in tiles of at most tile_b_max rows.
    if tile_b is None:
        n_tc = _num_tensorcores()
        per_core = -(-batch // n_tc)                               # ceil
        tile_b = min(tile_b_max, max(8, ((per_core + 7) // 8) * 8))
    bp = ((batch + tile_b - 1) // tile_b) * tile_b
    if bp != batch:
        # Pad rows with 0.5 (-> logit 0); results are sliced off below.
        x = jnp.pad(x, ((0, bp - batch), (0, 0)), constant_values=0.5)

    # Advisory cost so XLA schedules neighbors around this tiny kernel.
    weight_bytes = (w1t.size * 2 + b1k.size * 4 + wigo.size * 2 +
                    bgo.size * 4 + w2tp.size * 2 + b2p.size * 4)
    cost = pl.CostEstimate(
        flops=2 * bp * (in_size * hid + hid * 3 * hid + hid * out_pad),
        transcendentals=bp * (2 * in_size + 4 * hid + out_pad),
        bytes_accessed=bp * in_size * x.dtype.itemsize + bp * out_pad * 2
                       + weight_bytes,
    )

    const = lambda i: (0, 0)   # weights/biases stay VMEM-resident across grid steps
    out = pl.pallas_call(
        lstm_model_kernel,
        out_shape=jax.ShapeDtypeStruct((bp, out_pad), jnp.bfloat16),
        grid_spec=pltpu.PrefetchScalarGridSpec(
            num_scalar_prefetch=0,
            grid=(bp // tile_b,),
            in_specs=[
                pl.BlockSpec((tile_b, in_size), lambda i: (i, 0)),   # x
                pl.BlockSpec((in_size, hid), const),                 # w1t
                pl.BlockSpec((1, hid), const),                       # b1
                pl.BlockSpec((hid, 3 * hid), const),                 # wigo
                pl.BlockSpec((1, 3 * hid), const),                   # bgo
                pl.BlockSpec((hid, out_pad), const),                 # w2t (padded)
                pl.BlockSpec((1, out_pad), const),                   # b2  (padded)
            ],
            out_specs=pl.BlockSpec((tile_b, out_pad), lambda i: (i, 0)),
        ),
        compiler_params=pltpu.CompilerParams(
            dimension_semantics=("parallel",),      # v7x: shard batch over 2 TCs
            vmem_limit_bytes=32 * 1024 * 1024,      # ample for tile_b <= 1024
        ),
        cost_estimate=cost,
    )(x, w1t, b1k, wigo, bgo, w2tp, b2p)
    return out[:batch, :out_size].astype(jnp.float32)


def init_torch_params(key, input_size, hidden_units, output_size):
    """f32 parameters with the exact PyTorch shapes/init-style of LSTMModel."""
    ks = jax.random.split(key, 8)

    def u(k, shape, fan_in):
        bound = 1.0 / math.sqrt(fan_in)
        return jax.random.uniform(k, shape, jnp.float32, -bound, bound)

    w1 = u(ks[0], (hidden_units, input_size), input_size)            # fc1.weight
    b1 = u(ks[1], (hidden_units,), input_size)                       # fc1.bias
    w_ih = u(ks[2], (4 * hidden_units, hidden_units), hidden_units)  # lstm.weight_ih_l0
    w_hh = u(ks[3], (4 * hidden_units, hidden_units), hidden_units)  # lstm.weight_hh_l0
    b_ih = u(ks[4], (4 * hidden_units,), hidden_units)               # lstm.bias_ih_l0
    b_hh = u(ks[5], (4 * hidden_units,), hidden_units)               # lstm.bias_hh_l0
    w2 = u(ks[6], (output_size, hidden_units), hidden_units)         # fc2.weight
    b2 = u(ks[7], (output_size,), hidden_units)                      # fc2.bias
    return w1, b1, w_ih, w_hh, b_ih, b_hh, w2, b2


def reference_forward(x, torch_params):
    """Pure-JAX f32 reference implementing the full PyTorch forward (h0=c0=0)."""
    w1, b1, w_ih, w_hh, b_ih, b_hh, w2, b2 = torch_params
    eps = 1e-6
    xc = jnp.clip(x, eps, 1.0 - eps)
    xl = jnp.log(xc / (1.0 - xc))
    h1 = jnp.maximum(xl @ w1.T + b1, 0.0)
    gates = h1 @ w_ih.T + b_ih + b_hh          # + h0 @ w_hh.T, h0 == 0
    i_g, f_g, g_g, o_g = jnp.split(gates, 4, axis=-1)
    c = jax.nn.sigmoid(f_g) * 0.0 + jax.nn.sigmoid(i_g) * jnp.tanh(g_g)
    h = jax.nn.sigmoid(o_g) * jnp.tanh(c)
    return jax.nn.sigmoid(h @ w2.T + b2)


if __name__ == "__main__":
    # Module-default feature sizes (768 -> 128 -> 9); small batch for the demo.
    # Grid is 1 step on v5e/v6e and 2 steps (one per TC) on v7x.
    BATCH, INPUT_SIZE, HIDDEN, OUTPUT = 64, 768, 128, 9

    key = jax.random.PRNGKey(0)
    k_x, k_p = jax.random.split(key)

    # Inputs in (0, 1) as implied by the clamp/logit preprocessing.
    x = jax.random.uniform(k_x, (BATCH, INPUT_SIZE), jnp.float32,
                           minval=0.001, maxval=0.999)
    torch_params = init_torch_params(k_p, INPUT_SIZE, HIDDEN, OUTPUT)
    kernel_params, out_size = pack_params(torch_params)

    out = lstm_model_forward(x, kernel_params, out_size)
    jax.block_until_ready(out)

    ref = reference_forward(x, torch_params)
    assert out.shape == (BATCH, OUTPUT)
    # bf16 weights/activations + bf16 output + approx reciprocal vs. f32
    # reference -> relaxed tolerance on the sigmoid outputs.
    assert jnp.max(jnp.abs(out - ref)) < 4e-2, float(jnp.max(jnp.abs(out - ref)))

    print("KERNEL_OK")
</pallas_src>

<mosaic_0001>
module attributes {stable_mosaic.version = 11 : i64} {
  func.func @lstm_model_kernel(%arg0: i32, %arg1: memref<64x768xf32, #tpu.memory_space<vmem>>, %arg2: memref<768x128xbf16, #tpu.memory_space<vmem>>, %arg3: memref<1x128xf32, #tpu.memory_space<vmem>>, %arg4: memref<128x384xbf16, #tpu.memory_space<vmem>>, %arg5: memref<1x384xf32, #tpu.memory_space<vmem>>, %arg6: memref<128x128xbf16, #tpu.memory_space<vmem>>, %arg7: memref<1x128xf32, #tpu.memory_space<vmem>>, %arg8: memref<64x128xbf16, #tpu.memory_space<vmem>>) attributes {dimension_semantics = [#tpu.dimension_semantics<parallel>], iteration_bounds = array<i64: 1>, scalar_prefetch = 0 : i64, scratch_operands = 0 : i64, tpu.core_type = #tpu.core_type<tc>, window_params = [{transform_indices = @transform_0, window_bounds = array<i64: 64, 768>}, {pipeline_mode = #tpu.pipeline_mode<synchronous>, transform_indices = @transform_1, window_bounds = array<i64: 768, 128>}, {pipeline_mode = #tpu.pipeline_mode<synchronous>, transform_indices = @transform_2, window_bounds = array<i64: 1, 128>}, {pipeline_mode = #tpu.pipeline_mode<synchronous>, transform_indices = @transform_3, window_bounds = array<i64: 128, 384>}, {pipeline_mode = #tpu.pipeline_mode<synchronous>, transform_indices = @transform_4, window_bounds = array<i64: 1, 384>}, {pipeline_mode = #tpu.pipeline_mode<synchronous>, transform_indices = @transform_5, window_bounds = array<i64: 128, 128>}, {pipeline_mode = #tpu.pipeline_mode<synchronous>, transform_indices = @transform_6, window_bounds = array<i64: 1, 128>}, {transform_indices = @transform_7, window_bounds = array<i64: 64, 128>}]} {
    %c0 = arith.constant 0 : index
    %c0_0 = arith.constant 0 : index
    %0 = vector.load %arg1[%c0, %c0_0] : memref<64x768xf32, #tpu.memory_space<vmem>>, vector<64x768xf32>
    %cst = arith.constant 9.99999997E-7 : f32
    %cst_1 = arith.constant 0.999998986 : f32
    %1 = vector.broadcast %cst : f32 to vector<64x768xf32>
    %2 = arith.maximumf %1, %0 : vector<64x768xf32>
    %3 = vector.broadcast %cst_1 : f32 to vector<64x768xf32>
    %4 = arith.minimumf %3, %2 : vector<64x768xf32>
    %cst_2 = arith.constant 1.000000e+00 : f32
    %5 = vector.broadcast %cst_2 : f32 to vector<64x768xf32>
    %6 = arith.subf %5, %4 : vector<64x768xf32>
    %7 = tpu.reciprocal %6 {approx = true} : vector<64x768xf32> -> vector<64x768xf32>
    %8 = arith.mulf %4, %7 : vector<64x768xf32>
    %9 = math.log %8 : vector<64x768xf32>
    %10 = arith.truncf %9 : vector<64x768xf32> to vector<64x768xbf16>
    %c0_3 = arith.constant 0 : index
    %c0_4 = arith.constant 0 : index
    %11 = vector.load %arg2[%c0_3, %c0_4] : memref<768x128xbf16, #tpu.memory_space<vmem>>, vector<768x128xbf16>
    %cst_5 = arith.constant dense<0.000000e+00> : vector<64x128xf32>
    %12 = tpu.matmul %10, %11, %cst_5 {dimension_numbers = #tpu.dot_dimension_numbers<[1], [0], [0], [1], [0, 0, 1, 1], [], []>} : vector<64x768xbf16>, vector<768x128xbf16>, vector<64x128xf32> -> vector<64x128xf32>
    %c0_6 = arith.constant 0 : index
    %c0_7 = arith.constant 0 : index
    %13 = vector.load %arg3[%c0_6, %c0_7] : memref<1x128xf32, #tpu.memory_space<vmem>>, vector<1x128xf32>
    %14 = vector.broadcast %13 : vector<1x128xf32> to vector<64x128xf32>
    %15 = arith.addf %12, %14 : vector<64x128xf32>
    %cst_8 = arith.constant 0.000000e+00 : f32
    %16 = vector.broadcast %cst_8 : f32 to vector<64x128xf32>
    %17 = arith.maximumf %15, %16 : vector<64x128xf32>
    %18 = arith.truncf %17 : vector<64x128xf32> to vector<64x128xbf16>
    %c0_9 = arith.constant 0 : index
    %c0_10 = arith.constant 0 : index
    %19 = vector.load %arg4[%c0_9, %c0_10] : memref<128x384xbf16, #tpu.memory_space<vmem>>, vector<128x384xbf16>
    %cst_11 = arith.constant dense<0.000000e+00> : vector<64x384xf32>
    %20 = tpu.matmul %18, %19, %cst_11 {dimension_numbers = #tpu.dot_dimension_numbers<[1], [0], [0], [1], [0, 0, 1, 1], [], []>} : vector<64x128xbf16>, vector<128x384xbf16>, vector<64x384xf32> -> vector<64x384xf32>
    %c0_12 = arith.constant 0 : index
    %c0_13 = arith.constant 0 : index
    %21 = vector.load %arg5[%c0_12, %c0_13] : memref<1x384xf32, #tpu.memory_space<vmem>>, vector<1x384xf32>
    %22 = vector.broadcast %21 : vector<1x384xf32> to vector<64x384xf32>
    %23 = arith.addf %20, %22 : vector<64x384xf32>
    %24 = vector.extract_strided_slice %23 {offsets = [0, 0], sizes = [64, 128], strides = [1, 1]} : vector<64x384xf32> to vector<64x128xf32>
    %25 = arith.negf %24 : vector<64x128xf32>
    %26 = math.exp %25 : vector<64x128xf32>
    %cst_14 = arith.constant 1.000000e+00 : f32
    %27 = vector.broadcast %cst_14 : f32 to vector<64x128xf32>
    %28 = arith.addf %27, %26 : vector<64x128xf32>
    %29 = arith.divf %27, %28 : vector<64x128xf32>
    %30 = vector.extract_strided_slice %23 {offsets = [0, 128], sizes = [64, 128], strides = [1, 1]} : vector<64x384xf32> to vector<64x128xf32>
    %31 = math.tanh %30 : vector<64x128xf32>
    %32 = vector.extract_strided_slice %23 {offsets = [0, 256], sizes = [64, 128], strides = [1, 1]} : vector<64x384xf32> to vector<64x128xf32>
    %33 = arith.negf %32 : vector<64x128xf32>
    %34 = math.exp %33 : vector<64x128xf32>
    %cst_15 = arith.constant 1.000000e+00 : f32
    %35 = vector.broadcast %cst_15 : f32 to vector<64x128xf32>
    %36 = arith.addf %35, %34 : vector<64x128xf32>
    %37 = arith.divf %35, %36 : vector<64x128xf32>
    %38 = arith.mulf %29, %31 : vector<64x128xf32>
    %39 = math.tanh %38 : vector<64x128xf32>
    %40 = arith.mulf %37, %39 : vector<64x128xf32>
    %41 = arith.truncf %40 : vector<64x128xf32> to vector<64x128xbf16>
    %c0_16 = arith.constant 0 : index
    %c0_17 = arith.constant 0 : index
    %42 = vector.load %arg6[%c0_16, %c0_17] : memref<128x128xbf16, #tpu.memory_space<vmem>>, vector<128x128xbf16>
    %cst_18 = arith.constant dense<0.000000e+00> : vector<64x128xf32>
    %43 = tpu.matmul %41, %42, %cst_18 {dimension_numbers = #tpu.dot_dimension_numbers<[1], [0], [0], [1], [0, 0, 1, 1], [], []>} : vector<64x128xbf16>, vector<128x128xbf16>, vector<64x128xf32> -> vector<64x128xf32>
    %c0_19 = arith.constant 0 : index
    %c0_20 = arith.constant 0 : index
    %44 = vector.load %arg7[%c0_19, %c0_20] : memref<1x128xf32, #tpu.memory_space<vmem>>, vector<1x128xf32>
    %45 = vector.broadcast %44 : vector<1x128xf32> to vector<64x128xf32>
    %46 = arith.addf %43, %45 : vector<64x128xf32>
    %47 = arith.negf %46 : vector<64x128xf32>
    %48 = math.exp %47 : vector<64x128xf32>
    %cst_21 = arith.constant 1.000000e+00 : f32
    %49 = vector.broadcast %cst_21 : f32 to vector<64x128xf32>
    %50 = arith.addf %49, %48 : vector<64x128xf32>
    %51 = arith.divf %49, %50 : vector<64x128xf32>
    %52 = arith.truncf %51 : vector<64x128xf32> to vector<64x128xbf16>
    %c0_22 = arith.constant 0 : index
    %c0_23 = arith.constant 0 : index
    %53 = vector.load %arg8[%c0_22, %c0_23] : memref<64x128xbf16, #tpu.memory_space<vmem>>, vector<64x128xbf16>
    tpu.vector_store %arg8[%c0_22, %c0_23], %52 {strides = array<i32>} : memref<64x128xbf16, #tpu.memory_space<vmem>>, vector<64x128xbf16>,
    return
  }
  func.func @transform_0(%arg0: i32) -> (i32, i32) {
    %c0_i32 = arith.constant 0 : i32
    %c0_i32_0 = arith.constant 0 : i32
    return %arg0, %c0_i32 : i32, i32
  }
  func.func @transform_1(%arg0: i32) -> (i32, i32) {
    %c0_i32 = arith.constant 0 : i32
    %c0_i32_0 = arith.constant 0 : i32
    %c0_i32_1 = arith.constant 0 : i32
    return %c0_i32, %c0_i32_0 : i32, i32
  }
  func.func @transform_2(%arg0: i32) -> (i32, i32) {
    %c0_i32 = arith.constant 0 : i32
    %c0_i32_0 = arith.constant 0 : i32
    %c0_i32_1 = arith.constant 0 : i32
    return %c0_i32, %c0_i32_0 : i32, i32
  }
  func.func @transform_3(%arg0: i32) -> (i32, i32) {
    %c0_i32 = arith.constant 0 : i32
    %c0_i32_0 = arith.constant 0 : i32
    %c0_i32_1 = arith.constant 0 : i32
    return %c0_i32, %c0_i32_0 : i32, i32
  }
  func.func @transform_4(%arg0: i32) -> (i32, i32) {
    %c0_i32 = arith.constant 0 : i32
    %c0_i32_0 = arith.constant 0 : i32
    %c0_i32_1 = arith.constant 0 : i32
    return %c0_i32, %c0_i32_0 : i32, i32
  }
  func.func @transform_5(%arg0: i32) -> (i32, i32) {
    %c0_i32 = arith.constant 0 : i32
    %c0_i32_0 = arith.constant 0 : i32
    %c0_i32_1 = arith.constant 0 : i32
    return %c0_i32, %c0_i32_0 : i32, i32
  }
  func.func @transform_6(%arg0: i32) -> (i32, i32) {
    %c0_i32 = arith.constant 0 : i32
    %c0_i32_0 = arith.constant 0 : i32
    %c0_i32_1 = arith.constant 0 : i32
    return %c0_i32, %c0_i32_0 : i32, i32
  }
  func.func @transform_7(%arg0: i32) -> (i32, i32) {
    %c0_i32 = arith.constant 0 : i32
    %c0_i32_0 = arith.constant 0 : i32
    return %arg0, %c0_i32 : i32, i32
  }
}

</mosaic_0001>

<llo_original>
// kernel: tpu_custom_call.1
$region0: #{tpu_custom_call.1}
  #allocation0 [shape = 'u32[]', space=smem, size = 0x4, offset = 0x4, fixed_abs, tag = 'smem constant byte address 0x4 - core index']
  #allocation1 [shape = 'u32[72,128]{1,0:T(1,128)}', space=vmem, size = 0x9000, scoped, tag = 'internal scratch']
  %s0 = inlined_call_operand.hbm [shape: f32[64,768], index: 0, kind: input, shape index: {}]
  %s1 = inlined_call_operand.hbm [shape: bf16[768,128], index: 1, kind: input, shape index: {}]
  %s2 = inlined_call_operand.hbm [shape: f32[1,128], index: 2, kind: input, shape index: {}]
  %s3 = inlined_call_operand.hbm [shape: bf16[128,384], index: 3, kind: input, shape index: {}]
  %s4 = inlined_call_operand.vmem [shape: f32[1,384], index: 4, kind: input, shape index: {}]
  %s5 = inlined_call_operand.hbm [shape: bf16[128,128], index: 5, kind: input, shape index: {}]
  %s6 = inlined_call_operand.vmem [shape: f32[1,128], index: 6, kind: input, shape index: {}]
  %s7 = inlined_call_operand.hbm [shape: bf16[64,128], index: 7, kind: output, shape index: {}]
  %s8 = sld [smem:[#allocation0]]
  $region58: #{tpu_custom_call.1} parent=0
    _
  %s10 = ssub.s32 1, %s8
  %s11 = scalar_select 0, %s10, %s8
  $region1: #{tpu_custom_call.1} parent=0
    #allocation2 [shape = 'u8[196608]{0}', space=vmem, size = 0x30000, scoped, tag = 'input window, operand 0, single buffered']
    #allocation3 [shape = 's32[1]{0}', space=sflag, size = 0x4, scoped, tag = 'scoped memory for tpu_custom_call.1']
    #allocation4 [shape = 's32[1]{0}', space=sflag, size = 0x4, scoped, tag = 'scoped memory for tpu_custom_call.1']
    #allocation5 [shape = 'u8[196608]{0}', space=vmem, size = 0x30000, scoped, tag = 'input window, operand 1, single buffered']
    #allocation6 [shape = 's32[1]{0}', space=sflag, size = 0x4, scoped, tag = 'scoped memory for tpu_custom_call.1']
    #allocation7 [shape = 'u8[512]{0}', space=vmem, size = 0x400, scoped, tag = 'input window, operand 2, single buffered']
    #allocation8 [shape = 'u8[98304]{0}', space=vmem, size = 0x18000, scoped, tag = 'input window, operand 3, single buffered']
    #allocation9 [shape = 's32[1]{0}', space=sflag, size = 0x4, scoped, tag = 'scoped memory for tpu_custom_call.1']
    #allocation10 [shape = 'u8[32768]{0}', space=vmem, size = 0x8000, scoped, tag = 'input window, operand 5, single buffered']
    #allocation11 [shape = 'u8[16384]{0}', space=vmem, size = 0x4000, scoped, tag = 'output window, operand 0, single buffered']
    %12 = vsyncpa [#allocation3], 0
    %13 = vsyncpa [#allocation6], 0
    %14 = vsyncpa [#allocation9], 0
    %15 = vsyncpa [#allocation4], 0
    // Predicated region
    $region2: #{tpu_custom_call.1} parent=1 // pred_check
      _
    $region3: #{tpu_custom_call.1} parent=1 // pred_check_branch
      %17 = sbr.rel (0) target = $region5
    $region4: #{tpu_custom_call.1} parent=1 // pred_region
      %19 = vsyncadd [#allocation3], 0
      %s20 = sshll.u32 %s0, 4
      %s21 = int_to_ptr.hbm [resolvable:$true] %s20
      %s22 = sshll.u32 [#allocation2], 4
      %s23 = int_to_ptr.vmem [resolvable:$true] %s22
      %28 = dma.hbm_to_vmem [thread:$0]  %s21, 6144, %s23, [#allocation3], 768, 768, 48
    $region5: #{tpu_custom_call.1} parent=1 // pred_fallthru
      _
    // Predicated region
    $region6: #{tpu_custom_call.1} parent=1 // pred_check
      _
    $region7: #{tpu_custom_call.1} parent=1 // pred_check_branch
      %30 = sbr.rel (0) target = $region9
    $region8: #{tpu_custom_call.1} parent=1 // pred_region
      %32 = vsyncadd [#allocation6], 0
      %s33 = sshll.u32 %s1, 4
      %s34 = int_to_ptr.hbm [resolvable:$true] %s33
      %s35 = sshll.u32 [#allocation5], 4
      %s36 = int_to_ptr.vmem [resolvable:$true] %s35
      %41 = dma.hbm_to_vmem [thread:$0]  %s34, 6144, %s36, [#allocation6], 64, 64, 4
    $region9: #{tpu_custom_call.1} parent=1 // pred_fallthru
      _
    // Predicated region
    $region10: #{tpu_custom_call.1} parent=1 // pred_check
      _
    $region11: #{tpu_custom_call.1} parent=1 // pred_check_branch
      %43 = sbr.rel (0) target = $region13
    $region12: #{tpu_custom_call.1} parent=1 // pred_region
      %45 = vsyncadd [#allocation6], 0
      %s47 = sshll.u32 %s2, 4
      %s48 = int_to_ptr.hbm [resolvable:$true] %s47
      %s49 = sshll.u32 [#allocation7], 4
      %s50 = int_to_ptr.vmem [resolvable:$true] %s49
      %52 = dma.hbm_to_vmem [thread:$0]  %s48, 16, %s50, [#allocation6]
    $region13: #{tpu_custom_call.1} parent=1 // pred_fallthru
      _
    // Predicated region
    $region14: #{tpu_custom_call.1} parent=1 // pred_check
      _
    $region15: #{tpu_custom_call.1} parent=1 // pred_check_branch
      %54 = sbr.rel (0) target = $region17
    $region16: #{tpu_custom_call.1} parent=1 // pred_region
      %56 = vsyncadd [#allocation9], 0
      %s57 = sshll.u32 %s3, 4
      %s58 = int_to_ptr.hbm [resolvable:$true] %s57
      %s59 = sshll.u32 [#allocation8], 4
      %s60 = int_to_ptr.vmem [resolvable:$true] %s59
      %65 = dma.hbm_to_vmem [thread:$0]  %s58, 3072, %s60, [#allocation9], 192, 192, 12
    $region17: #{tpu_custom_call.1} parent=1 // pred_fallthru
      _
    // Predicated region
    $region18: #{tpu_custom_call.1} parent=1 // pred_check
      _
    $region19: #{tpu_custom_call.1} parent=1 // pred_check_branch
      %67 = sbr.rel (0) target = $region21
    $region20: #{tpu_custom_call.1} parent=1 // pred_region
      _
    $region21: #{tpu_custom_call.1} parent=1 // pred_fallthru
      _
    // Predicated region
    $region22: #{tpu_custom_call.1} parent=1 // pred_check
      _
    $region23: #{tpu_custom_call.1} parent=1 // pred_check_branch
      %69 = sbr.rel (0) target = $region25
    $region24: #{tpu_custom_call.1} parent=1 // pred_region
      %71 = vsyncadd [#allocation9], 0
      %s72 = sshll.u32 %s5, 4
      %s73 = int_to_ptr.hbm [resolvable:$true] %s72
      %s74 = sshll.u32 [#allocation10], 4
      %s75 = int_to_ptr.vmem [resolvable:$true] %s74
      %80 = dma.hbm_to_vmem [thread:$0]  %s73, 1024, %s75, [#allocation9], 64, 64, 4
    $region25: #{tpu_custom_call.1} parent=1 // pred_fallthru
      _
    // Predicated region
    $region26: #{tpu_custom_call.1} parent=1 // pred_check
      _
    $region27: #{tpu_custom_call.1} parent=1 // pred_check_branch
      %82 = sbr.rel (0) target = $region29
    $region28: #{tpu_custom_call.1} parent=1 // pred_region
      _
    $region29: #{tpu_custom_call.1} parent=1 // pred_fallthru
      _
    // Predicated region
    $region30: #{tpu_custom_call.1} parent=1 // pred_check
      _
    $region31: #{tpu_custom_call.1} parent=1 // pred_check_branch
      %84 = sbr.rel (0) target = $region33
    $region32: #{tpu_custom_call.1} parent=1 // pred_region
      %86 = dma.done [#allocation3], 6144
    $region33: #{tpu_custom_call.1} parent=1 // pred_fallthru
      _
    // Predicated region
    $region34: #{tpu_custom_call.1} parent=1 // pred_check
      _
    $region35: #{tpu_custom_call.1} parent=1 // pred_check_branch
      %88 = sbr.rel (0) target = $region37
    $region36: #{tpu_custom_call.1} parent=1 // pred_region
      %90 = dma.done [#allocation6], 6144
    $region37: #{tpu_custom_call.1} parent=1 // pred_fallthru
      _
    // Predicated region
    $region38: #{tpu_custom_call.1} parent=1 // pred_check
      _
    $region39: #{tpu_custom_call.1} parent=1 // pred_check_branch
      %92 = sbr.rel (0) target = $region41
    $region40: #{tpu_custom_call.1} parent=1 // pred_region
      %94 = dma.done [#allocation6], 16
    $region41: #{tpu_custom_call.1} parent=1 // pred_fallthru
      _
    // Predicated region
    $region42: #{tpu_custom_call.1} parent=1 // pred_check
      _
    $region43: #{tpu_custom_call.1} parent=1 // pred_check_branch
      %96 = sbr.rel (0) target = $region45
    $region44: #{tpu_custom_call.1} parent=1 // pred_region
      %98 = dma.done [#allocation9], 3072
    $region45: #{tpu_custom_call.1} parent=1 // pred_fallthru
      _
    // Predicated region
    $region46: #{tpu_custom_call.1} parent=1 // pred_check
      _
    $region47: #{tpu_custom_call.1} parent=1 // pred_check_branch
      %100 = sbr.rel (0) target = $region49
    $region48: #{tpu_custom_call.1} parent=1 // pred_region
      %102 = dma.done [#allocation9], 1024
    $region49: #{tpu_custom_call.1} parent=1 // pred_fallthru
      _
    %v103 = vld [vmem:[#allocation2] sm:$0xff]
    %v104 = vld [vmem:[#allocation2 + $0x8] sm:$0xff]
    %v105 = vld [vmem:[#allocation2 + $0x10] sm:$0xff]
    %v106 = vld [vmem:[#allocation2 + $0x18] sm:$0xff]
    %v107 = vld [vmem:[#allocation2 + $0x20] sm:$0xff]
    %v108 = vld [vmem:[#allocation2 + $0x28] sm:$0xff]
    %v109 = vld [vmem:[#allocation2 + $0x30] sm:$0xff]
    %v110 = vld [vmem:[#allocation2 + $0x38] sm:$0xff]
    %v111 = vld [vmem:[#allocation2 + $0x40] sm:$0xff]
    %v112 = vld [vmem:[#allocation2 + $0x48] sm:$0xff]
    %v113 = vld [vmem:[#allocation2 + $0x50] sm:$0xff]
    %v114 = vld [vmem:[#allocation2 + $0x58] sm:$0xff]
    %v115 = vld [vmem:[#allocation2 + $0x60] sm:$0xff]
    %v116 = vld [vmem:[#allocation2 + $0x68] sm:$0xff]
    %v117 = vld [vmem:[#allocation2 + $0x70] sm:$0xff]
    %v118 = vld [vmem:[#allocation2 + $0x78] sm:$0xff]
    %v119 = vld [vmem:[#allocation2 + $0x80] sm:$0xff]
    %v120 = vld [vmem:[#allocation2 + $0x88] sm:$0xff]
    %v121 = vld [vmem:[#allocation2 + $0x90] sm:$0xff]
    %v122 = vld [vmem:[#allocation2 + $0x98] sm:$0xff]
    %v123 = vld [vmem:[#allocation2 + $0xa0] sm:$0xff]
    %v124 = vld [vmem:[#allocation2 + $0xa8] sm:$0xff]
    %v125 = vld [vmem:[#allocation2 + $0xb0] sm:$0xff]
    %v126 = vld [vmem:[#allocation2 + $0xb8] sm:$0xff]
    %v127 = vld [vmem:[#allocation2 + $0xc0] sm:$0xff]
    %v128 = vld [vmem:[#allocation2 + $0xc8] sm:$0xff]
    %v129 = vld [vmem:[#allocation2 + $0xd0] sm:$0xff]
    %v130 = vld [vmem:[#allocation2 + $0xd8] sm:$0xff]
    %v131 = vld [vmem:[#allocation2 + $0xe0] sm:$0xff]
    %v132 = vld [vmem:[#allocation2 + $0xe8] sm:$0xff]
    %v133 = vld [vmem:[#allocation2 + $0xf0] sm:$0xff]
    %v134 = vld [vmem:[#allocation2 + $0xf8] sm:$0xff]
    %v135 = vld [vmem:[#allocation2 + $0x100] sm:$0xff]
    %v136 = vld [vmem:[#allocation2 + $0x108] sm:$0xff]
    %v137 = vld [vmem:[#allocation2 + $0x110] sm:$0xff]
    %v138 = vld [vmem:[#allocation2 + $0x118] sm:$0xff]
    %v139 = vld [vmem:[#allocation2 + $0x120] sm:$0xff]
    %v140 = vld [vmem:[#allocation2 + $0x128] sm:$0xff]
    %v141 = vld [vmem:[#allocation2 + $0x130] sm:$0xff]
    %v142 = vld [vmem:[#allocation2 + $0x138] sm:$0xff]
    %v143 = vld [vmem:[#allocation2 + $0x140] sm:$0xff]
    %v144 = vld [vmem:[#allocation2 + $0x148] sm:$0xff]
    %v145 = vld [vmem:[#allocation2 + $0x150] sm:$0xff]
    %v146 = vld [vmem:[#allocation2 + $0x158] sm:$0xff]
    %v147 = vld [vmem:[#allocation2 + $0x160] sm:$0xff]
    %v148 = vld [vmem:[#allocation2 + $0x168] sm:$0xff]
    %v149 = vld [vmem:[#allocation2 + $0x170] sm:$0xff]
    %v150 = vld [vmem:[#allocation2 + $0x178] sm:$0xff]
    %v151 = vmax.f32 %v103, 1e-06
    %v152 = vmax.f32 %v104, 1e-06
    %v153 = vmax.f32 %v105, 1e-06
    %v154 = vmax.f32 %v106, 1e-06
    %v155 = vmax.f32 %v107, 1e-06
    %v156 = vmax.f32 %v108, 1e-06
    %v157 = vmax.f32 %v109, 1e-06
    %v158 = vmax.f32 %v110, 1e-06
    %v159 = vmax.f32 %v111, 1e-06
    %v160 = vmax.f32 %v112, 1e-06
    %v161 = vmax.f32 %v113, 1e-06
    %v162 = vmax.f32 %v114, 1e-06
    %v163 = vmax.f32 %v115, 1e-06
    %v164 = vmax.f32 %v116, 1e-06
    %v165 = vmax.f32 %v117, 1e-06
    %v166 = vmax.f32 %v118, 1e-06
    %v167 = vmax.f32 %v119, 1e-06
    %v168 = vmax.f32 %v120, 1e-06
    %v169 = vmax.f32 %v121, 1e-06
    %v170 = vmax.f32 %v122, 1e-06
    %v171 = vmax.f32 %v123, 1e-06
    %v172 = vmax.f32 %v124, 1e-06
    %v173 = vmax.f32 %v125, 1e-06
    %v174 = vmax.f32 %v126, 1e-06
    %v175 = vmax.f32 %v127, 1e-06
    %v176 = vmax.f32 %v128, 1e-06
    %v177 = vmax.f32 %v129, 1e-06
    %v178 = vmax.f32 %v130, 1e-06
    %v179 = vmax.f32 %v131, 1e-06
    %v180 = vmax.f32 %v132, 1e-06
    %v181 = vmax.f32 %v133, 1e-06
    %v182 = vmax.f32 %v134, 1e-06
    %v183 = vmax.f32 %v135, 1e-06
    %v184 = vmax.f32 %v136, 1e-06
    %v185 = vmax.f32 %v137, 1e-06
    %v186 = vmax.f32 %v138, 1e-06
    %v187 = vmax.f32 %v139, 1e-06
    %v188 = vmax.f32 %v140, 1e-06
    %v189 = vmax.f32 %v141, 1e-06
    %v190 = vmax.f32 %v142, 1e-06
    %v191 = vmax.f32 %v143, 1e-06
    %v192 = vmax.f32 %v144, 1e-06
    %v193 = vmax.f32 %v145, 1e-06
    %v194 = vmax.f32 %v146, 1e-06
    %v195 = vmax.f32 %v147, 1e-06
    %v196 = vmax.f32 %v148, 1e-06
    %v197 = vmax.f32 %v149, 1e-06
    %v198 = vmax.f32 %v150, 1e-06
    %v199 = vmin.f32 %v151, 0.999999
    %v200 = vmin.f32 %v152, 0.999999
    %v201 = vmin.f32 %v153, 0.999999
    %v202 = vmin.f32 %v154, 0.999999
    %v203 = vmin.f32 %v155, 0.999999
    %v204 = vmin.f32 %v156, 0.999999
    %v205 = vmin.f32 %v157, 0.999999
    %v206 = vmin.f32 %v158, 0.999999
    %v207 = vmin.f32 %v159, 0.999999
    %v208 = vmin.f32 %v160, 0.999999
    %v209 = vmin.f32 %v161, 0.999999
    %v210 = vmin.f32 %v162, 0.999999
    %v211 = vmin.f32 %v163, 0.999999
    %v212 = vmin.f32 %v164, 0.999999
    %v213 = vmin.f32 %v165, 0.999999
    %v214 = vmin.f32 %v166, 0.999999
    %v215 = vmin.f32 %v167, 0.999999
    %v216 = vmin.f32 %v168, 0.999999
    %v217 = vmin.f32 %v169, 0.999999
    %v218 = vmin.f32 %v170, 0.999999
    %v219 = vmin.f32 %v171, 0.999999
    %v220 = vmin.f32 %v172, 0.999999
    %v221 = vmin.f32 %v173, 0.999999
    %v222 = vmin.f32 %v174, 0.999999
    %v223 = vmin.f32 %v175, 0.999999
    %v224 = vmin.f32 %v176, 0.999999
    %v225 = vmin.f32 %v177, 0.999999
    %v226 = vmin.f32 %v178, 0.999999
    %v227 = vmin.f32 %v179, 0.999999
    %v228 = vmin.f32 %v180, 0.999999
    %v229 = vmin.f32 %v181, 0.999999
    %v230 = vmin.f32 %v182, 0.999999
    %v231 = vmin.f32 %v183, 0.999999
    %v232 = vmin.f32 %v184, 0.999999
    %v233 = vmin.f32 %v185, 0.999999
    %v234 = vmin.f32 %v186, 0.999999
    %v235 = vmin.f32 %v187, 0.999999
    %v236 = vmin.f32 %v188, 0.999999
    %v237 = vmin.f32 %v189, 0.999999
    %v238 = vmin.f32 %v190, 0.999999
    %v239 = vmin.f32 %v191, 0.999999
    %v240 = vmin.f32 %v192, 0.999999
    %v241 = vmin.f32 %v193, 0.999999
    %v242 = vmin.f32 %v194, 0.999999
    %v243 = vmin.f32 %v195, 0.999999
    %v244 = vmin.f32 %v196, 0.999999
    %v245 = vmin.f32 %v197, 0.999999
    %v246 = vmin.f32 %v198, 0.999999
    %v247 = vsub.f32 1.0, %v199
    %v248 = vsub.f32 1.0, %v200
    %v249 = vsub.f32 1.0, %v201
    %v250 = vsub.f32 1.0, %v202
    %v251 = vsub.f32 1.0, %v203
    %v252 = vsub.f32 1.0, %v204
    %v253 = vsub.f32 1.0, %v205
    %v254 = vsub.f32 1.0, %v206
    %v255 = vsub.f32 1.0, %v207
    %v256 = vsub.f32 1.0, %v208
    %v257 = vsub.f32 1.0, %v209
    %v258 = vsub.f32 1.0, %v210
    %v259 = vsub.f32 1.0, %v211
    %v260 = vsub.f32 1.0, %v212
    %v261 = vsub.f32 1.0, %v213
    %v262 = vsub.f32 1.0, %v214
    %v263 = vsub.f32 1.0, %v215
    %v264 = vsub.f32 1.0, %v216
    %v265 = vsub.f32 1.0, %v217
    %v266 = vsub.f32 1.0, %v218
    %v267 = vsub.f32 1.0, %v219
    %v268 = vsub.f32 1.0, %v220
    %v269 = vsub.f32 1.0, %v221
    %v270 = vsub.f32 1.0, %v222
    %v271 = vsub.f32 1.0, %v223
    %v272 = vsub.f32 1.0, %v224
    %v273 = vsub.f32 1.0, %v225
    %v274 = vsub.f32 1.0, %v226
    %v275 = vsub.f32 1.0, %v227
    %v276 = vsub.f32 1.0, %v228
    %v277 = vsub.f32 1.0, %v229
    %v278 = vsub.f32 1.0, %v230
    %v279 = vsub.f32 1.0, %v231
    %v280 = vsub.f32 1.0, %v232
    %v281 = vsub.f32 1.0, %v233
    %v282 = vsub.f32 1.0, %v234
    %v283 = vsub.f32 1.0, %v235
    %v284 = vsub.f32 1.0, %v236
    %v285 = vsub.f32 1.0, %v237
    %v286 = vsub.f32 1.0, %v238
    %v287 = vsub.f32 1.0, %v239
    %v288 = vsub.f32 1.0, %v240
    %v289 = vsub.f32 1.0, %v241
    %v290 = vsub.f32 1.0, %v242
    %v291 = vsub.f32 1.0, %v243
    %v292 = vsub.f32 1.0, %v244
    %v293 = vsub.f32 1.0, %v245
    %v294 = vsub.f32 1.0, %v246
    %v295 = vrcp.pop %v247
    %v296 = vrcp.pop %v248
    %v297 = vrcp.pop %v249
    %v298 = vrcp.pop %v250
    %v299 = vrcp.pop %v251
    %v300 = vrcp.pop %v252
    %v301 = vrcp.pop %v253
    %v302 = vrcp.pop %v254
    %v303 = vrcp.pop %v255
    %v304 = vrcp.pop %v256
    %v305 = vrcp.pop %v257
    %v306 = vrcp.pop %v258
    %v307 = vrcp.pop %v259
    %v308 = vrcp.pop %v260
    %v309 = vrcp.pop %v261
    %v310 = vrcp.pop %v262
    %v311 = vrcp.pop %v263
    %v312 = vrcp.pop %v264
    %v313 = vrcp.pop %v265
    %v314 = vrcp.pop %v266
    %v315 = vrcp.pop %v267
    %v316 = vrcp.pop %v268
    %v317 = vrcp.pop %v269
    %v318 = vrcp.pop %v270
    %v319 = vrcp.pop %v271
    %v320 = vrcp.pop %v272
    %v321 = vrcp.pop %v273
    %v322 = vrcp.pop %v274
    %v323 = vrcp.pop %v275
    %v324 = vrcp.pop %v276
    %v325 = vrcp.pop %v277
    %v326 = vrcp.pop %v278
    %v327 = vrcp.pop %v279
    %v328 = vrcp.pop %v280
    %v329 = vrcp.pop %v281
    %v330 = vrcp.pop %v282
    %v331 = vrcp.pop %v283
    %v332 = vrcp.pop %v284
    %v333 = vrcp.pop %v285
    %v334 = vrcp.pop %v286
    %v335 = vrcp.pop %v287
    %v336 = vrcp.pop %v288
    %v337 = vrcp.pop %v289
    %v338 = vrcp.pop %v290
    %v339 = vrcp.pop %v291
    %v340 = vrcp.pop %v292
    %v341 = vrcp.pop %v293
    %v342 = vrcp.pop %v294
    %v343 = vmul.f32 %v199, %v295
    %v344 = vmul.f32 %v200, %v296
    %v345 = vmul.f32 %v201, %v297
    %v346 = vmul.f32 %v202, %v298
    %v347 = vmul.f32 %v203, %v299
    %v348 = vmul.f32 %v204, %v300
    %v349 = vmul.f32 %v205, %v301
    %v350 = vmul.f32 %v206, %v302
    %v351 = vmul.f32 %v207, %v303
    %v352 = vmul.f32 %v208, %v304
    %v353 = vmul.f32 %v209, %v305
    %v354 = vmul.f32 %v210, %v306
    %v355 = vmul.f32 %v211, %v307
    %v356 = vmul.f32 %v212, %v308
    %v357 = vmul.f32 %v213, %v309
    %v358 = vmul.f32 %v214, %v310
    %v359 = vmul.f32 %v215, %v311
    %v360 = vmul.f32 %v216, %v312
    %v361 = vmul.f32 %v217, %v313
    %v362 = vmul.f32 %v218, %v314
    %v363 = vmul.f32 %v219, %v315
    %v364 = vmul.f32 %v220, %v316
    %v365 = vmul.f32 %v221, %v317
    %v366 = vmul.f32 %v222, %v318
    %v367 = vmul.f32 %v223, %v319
    %v368 = vmul.f32 %v224, %v320
    %v369 = vmul.f32 %v225, %v321
    %v370 = vmul.f32 %v226, %v322
    %v371 = vmul.f32 %v227, %v323
    %v372 = vmul.f32 %v228, %v324
    %v373 = vmul.f32 %v229, %v325
    %v374 = vmul.f32 %v230, %v326
    %v375 = vmul.f32 %v231, %v327
    %v376 = vmul.f32 %v232, %v328
    %v377 = vmul.f32 %v233, %v329
    %v378 = vmul.f32 %v234, %v330
    %v379 = vmul.f32 %v235, %v331
    %v380 = vmul.f32 %v236, %v332
    %v381 = vmul.f32 %v237, %v333
    %v382 = vmul.f32 %v238, %v334
    %v383 = vmul.f32 %v239, %v335
    %v384 = vmul.f32 %v240, %v336
    %v385 = vmul.f32 %v241, %v337
    %v386 = vmul.f32 %v242, %v338
    %v387 = vmul.f32 %v243, %v339
    %v388 = vmul.f32 %v244, %v340
    %v389 = vmul.f32 %v245, %v341
    %v390 = vmul.f32 %v246, %v342
    %v391 = vlog2.pop %v343
    %v392 = vmul.f32 %v391, 0.6931472
    %v393 = vlog2.pop %v344
    %v394 = vmul.f32 %v393, 0.6931472
    %v395 = vlog2.pop %v345
    %v396 = vmul.f32 %v395, 0.6931472
    %v397 = vlog2.pop %v346
    %v398 = vmul.f32 %v397, 0.6931472
    %v399 = vlog2.pop %v347
    %v400 = vmul.f32 %v399, 0.6931472
    %v401 = vlog2.pop %v348
    %v402 = vmul.f32 %v401, 0.6931472
    %v403 = vlog2.pop %v349
    %v404 = vmul.f32 %v403, 0.6931472
    %v405 = vlog2.pop %v350
    %v406 = vmul.f32 %v405, 0.6931472
    %v407 = vlog2.pop %v351
    %v408 = vmul.f32 %v407, 0.6931472
    %v409 = vlog2.pop %v352
    %v410 = vmul.f32 %v409, 0.6931472
    %v411 = vlog2.pop %v353
    %v412 = vmul.f32 %v411, 0.6931472
    %v413 = vlog2.pop %v354
    %v414 = vmul.f32 %v413, 0.6931472
    %v415 = vlog2.pop %v355
    %v416 = vmul.f32 %v415, 0.6931472
    %v417 = vlog2.pop %v356
    %v418 = vmul.f32 %v417, 0.6931472
    %v419 = vlog2.pop %v357
    %v420 = vmul.f32 %v419, 0.6931472
    %v421 = vlog2.pop %v358
    %v422 = vmul.f32 %v421, 0.6931472
    %v423 = vlog2.pop %v359
    %v424 = vmul.f32 %v423, 0.6931472
    %v425 = vlog2.pop %v360
    %v426 = vmul.f32 %v425, 0.6931472
    %v427 = vlog2.pop %v361
    %v428 = vmul.f32 %v427, 0.6931472
    %v429 = vlog2.pop %v362
    %v430 = vmul.f32 %v429, 0.6931472
    %v431 = vlog2.pop %v363
    %v432 = vmul.f32 %v431, 0.6931472
    %v433 = vlog2.pop %v364
    %v434 = vmul.f32 %v433, 0.6931472
    %v435 = vlog2.pop %v365
    %v436 = vmul.f32 %v435, 0.6931472
    %v437 = vlog2.pop %v366
    %v438 = vmul.f32 %v437, 0.6931472
    %v439 = vlog2.pop %v367
    %v440 = vmul.f32 %v439, 0.6931472
    %v441 = vlog2.pop %v368
    %v442 = vmul.f32 %v441, 0.6931472
    %v443 = vlog2.pop %v369
    %v444 = vmul.f32 %v443, 0.6931472
    %v445 = vlog2.pop %v370
    %v446 = vmul.f32 %v445, 0.6931472
    %v447 = vlog2.pop %v371
    %v448 = vmul.f32 %v447, 0.6931472
    %v449 = vlog2.pop %v372
    %v450 = vmul.f32 %v449, 0.6931472
    %v451 = vlog2.pop %v373
    %v452 = vmul.f32 %v451, 0.6931472
    %v453 = vlog2.pop %v374
    %v454 = vmul.f32 %v453, 0.6931472
    %v455 = vlog2.pop %v375
    %v456 = vmul.f32 %v455, 0.6931472
    %v457 = vlog2.pop %v376
    %v458 = vmul.f32 %v457, 0.6931472
    %v459 = vlog2.pop %v377
    %v460 = vmul.f32 %v459, 0.6931472
    %v461 = vlog2.pop %v378
    %v462 = vmul.f32 %v461, 0.6931472
    %v463 = vlog2.pop %v379
    %v464 = vmul.f32 %v463, 0.6931472
    %v465 = vlog2.pop %v380
    %v466 = vmul.f32 %v465, 0.6931472
    %v467 = vlog2.pop %v381
    %v468 = vmul.f32 %v467, 0.6931472
    %v469 = vlog2.pop %v382
    %v470 = vmul.f32 %v469, 0.6931472
    %v471 = vlog2.pop %v383
    %v472 = vmul.f32 %v471, 0.6931472
    %v473 = vlog2.pop %v384
    %v474 = vmul.f32 %v473, 0.6931472
    %v475 = vlog2.pop %v385
    %v476 = vmul.f32 %v475, 0.6931472
    %v477 = vlog2.pop %v386
    %v478 = vmul.f32 %v477, 0.6931472
    %v479 = vlog2.pop %v387
    %v480 = vmul.f32 %v479, 0.6931472
    %v481 = vlog2.pop %v388
    %v482 = vmul.f32 %v481, 0.6931472
    %v483 = vlog2.pop %v389
    %v484 = vmul.f32 %v483, 0.6931472
    %v485 = vlog2.pop %v390
    %v486 = vmul.f32 %v485, 0.6931472
    %v487 = vpack.c.bf16 %v404, %v392
    %v488 = vpack.c.bf16 %v406, %v394
    %v489 = vpack.c.bf16 %v408, %v396
    %v490 = vpack.c.bf16 %v410, %v398
    %v491 = vpack.c.bf16 %v412, %v400
    %v492 = vpack.c.bf16 %v414, %v402
    %v493 = vpack.c.bf16 %v428, %v416
    %v494 = vpack.c.bf16 %v430, %v418
    %v495 = vpack.c.bf16 %v432, %v420
    %v496 = vpack.c.bf16 %v434, %v422
    %v497 = vpack.c.bf16 %v436, %v424
    %v498 = vpack.c.bf16 %v438, %v426
    %v499 = vpack.c.bf16 %v452, %v440
    %v500 = vpack.c.bf16 %v454, %v442
    %v501 = vpack.c.bf16 %v456, %v444
    %v502 = vpack.c.bf16 %v458, %v446
    %v503 = vpack.c.bf16 %v460, %v448
    %v504 = vpack.c.bf16 %v462, %v450
    %v505 = vpack.c.bf16 %v476, %v464
    %v506 = vpack.c.bf16 %v478, %v466
    %v507 = vpack.c.bf16 %v480, %v468
    %v508 = vpack.c.bf16 %v482, %v470
    %v509 = vpack.c.bf16 %v484, %v472
    %v510 = vpack.c.bf16 %v486, %v474
    %v511 = vld [vmem:[#allocation5] sm:$0xf]
    %v512 = vld [vmem:[#allocation5 + $0x4] sm:$0xf]
    %v513 = vld [vmem:[#allocation5 + $0x8] sm:$0xf]
    %v514 = vld [vmem:[#allocation5 + $0xc] sm:$0xf]
    %v515 = vld [vmem:[#allocation5 + $0x10] sm:$0xf]
    %v516 = vld [vmem:[#allocation5 + $0x14] sm:$0xf]
    %v517 = vld [vmem:[#allocation5 + $0x18] sm:$0xf]
    %v518 = vld [vmem:[#allocation5 + $0x1c] sm:$0xf]
    %v519 = vld [vmem:[#allocation5 + $0x20] sm:$0xf]
    %v520 = vld [vmem:[#allocation5 + $0x24] sm:$0xf]
    %v521 = vld [vmem:[#allocation5 + $0x28] sm:$0xf]
    %v522 = vld [vmem:[#allocation5 + $0x2c] sm:$0xf]
    %v523 = vld [vmem:[#allocation5 + $0x30] sm:$0xf]
    %v524 = vld [vmem:[#allocation5 + $0x34] sm:$0xf]
    %v525 = vld [vmem:[#allocation5 + $0x38] sm:$0xf]
    %v526 = vld [vmem:[#allocation5 + $0x3c] sm:$0xf]
    %v527 = vld [vmem:[#allocation5 + $0x40] sm:$0xf]
    %v528 = vld [vmem:[#allocation5 + $0x44] sm:$0xf]
    %v529 = vld [vmem:[#allocation5 + $0x48] sm:$0xf]
    %v530 = vld [vmem:[#allocation5 + $0x4c] sm:$0xf]
    %v531 = vld [vmem:[#allocation5 + $0x50] sm:$0xf]
    %v532 = vld [vmem:[#allocation5 + $0x54] sm:$0xf]
    %v533 = vld [vmem:[#allocation5 + $0x58] sm:$0xf]
    %v534 = vld [vmem:[#allocation5 + $0x5c] sm:$0xf]
    %v535 = vld [vmem:[#allocation5 + $0x60] sm:$0xf]
    %v536 = vld [vmem:[#allocation5 + $0x64] sm:$0xf]
    %v537 = vld [vmem:[#allocation5 + $0x68] sm:$0xf]
    %v538 = vld [vmem:[#allocation5 + $0x6c] sm:$0xf]
    %v539 = vld [vmem:[#allocation5 + $0x70] sm:$0xf]
    %v540 = vld [vmem:[#allocation5 + $0x74] sm:$0xf]
    %v541 = vld [vmem:[#allocation5 + $0x78] sm:$0xf]
    %v542 = vld [vmem:[#allocation5 + $0x7c] sm:$0xf]
    %v543 = vld [vmem:[#allocation5 + $0x80] sm:$0xf]
    %v544 = vld [vmem:[#allocation5 + $0x84] sm:$0xf]
    %v545 = vld [vmem:[#allocation5 + $0x88] sm:$0xf]
    %v546 = vld [vmem:[#allocation5 + $0x8c] sm:$0xf]
    %v547 = vld [vmem:[#allocation5 + $0x90] sm:$0xf]
    %v548 = vld [vmem:[#allocation5 + $0x94] sm:$0xf]
    %v549 = vld [vmem:[#allocation5 + $0x98] sm:$0xf]
    %v550 = vld [vmem:[#allocation5 + $0x9c] sm:$0xf]
    %v551 = vld [vmem:[#allocation5 + $0xa0] sm:$0xf]
    %v552 = vld [vmem:[#allocation5 + $0xa4] sm:$0xf]
    %v553 = vld [vmem:[#allocation5 + $0xa8] sm:$0xf]
    %v554 = vld [vmem:[#allocation5 + $0xac] sm:$0xf]
    %v555 = vld [vmem:[#allocation5 + $0xb0] sm:$0xf]
    %v556 = vld [vmem:[#allocation5 + $0xb4] sm:$0xf]
    %v557 = vld [vmem:[#allocation5 + $0xb8] sm:$0xf]
    %v558 = vld [vmem:[#allocation5 + $0xbc] sm:$0xf]
    %v559 = vld [vmem:[#allocation5 + $0xc0] sm:$0xf]
    %v560 = vld [vmem:[#allocation5 + $0xc4] sm:$0xf]
    %v561 = vld [vmem:[#allocation5 + $0xc8] sm:$0xf]
    %v562 = vld [vmem:[#allocation5 + $0xcc] sm:$0xf]
    %v563 = vld [vmem:[#allocation5 + $0xd0] sm:$0xf]
    %v564 = vld [vmem:[#allocation5 + $0xd4] sm:$0xf]
    %v565 = vld [vmem:[#allocation5 + $0xd8] sm:$0xf]
    %v566 = vld [vmem:[#allocation5 + $0xdc] sm:$0xf]
    %v567 = vld [vmem:[#allocation5 + $0xe0] sm:$0xf]
    %v568 = vld [vmem:[#allocation5 + $0xe4] sm:$0xf]
    %v569 = vld [vmem:[#allocation5 + $0xe8] sm:$0xf]
    %v570 = vld [vmem:[#allocation5 + $0xec] sm:$0xf]
    %v571 = vld [vmem:[#allocation5 + $0xf0] sm:$0xf]
    %v572 = vld [vmem:[#allocation5 + $0xf4] sm:$0xf]
    %v573 = vld [vmem:[#allocation5 + $0xf8] sm:$0xf]
    %v574 = vld [vmem:[#allocation5 + $0xfc] sm:$0xf]
    %v575 = vld [vmem:[#allocation5 + $0x100] sm:$0xf]
    %v576 = vld [vmem:[#allocation5 + $0x104] sm:$0xf]
    %v577 = vld [vmem:[#allocation5 + $0x108] sm:$0xf]
    %v578 = vld [vmem:[#allocation5 + $0x10c] sm:$0xf]
    %v579 = vld [vmem:[#allocation5 + $0x110] sm:$0xf]
    %v580 = vld [vmem:[#allocation5 + $0x114] sm:$0xf]
    %v581 = vld [vmem:[#allocation5 + $0x118] sm:$0xf]
    %v582 = vld [vmem:[#allocation5 + $0x11c] sm:$0xf]
    %v583 = vld [vmem:[#allocation5 + $0x120] sm:$0xf]
    %v584 = vld [vmem:[#allocation5 + $0x124] sm:$0xf]
    %v585 = vld [vmem:[#allocation5 + $0x128] sm:$0xf]
    %v586 = vld [vmem:[#allocation5 + $0x12c] sm:$0xf]
    %v587 = vld [vmem:[#allocation5 + $0x130] sm:$0xf]
    %v588 = vld [vmem:[#allocation5 + $0x134] sm:$0xf]
    %v589 = vld [vmem:[#allocation5 + $0x138] sm:$0xf]
    %v590 = vld [vmem:[#allocation5 + $0x13c] sm:$0xf]
    %v591 = vld [vmem:[#allocation5 + $0x140] sm:$0xf]
    %v592 = vld [vmem:[#allocation5 + $0x144] sm:$0xf]
    %v593 = vld [vmem:[#allocation5 + $0x148] sm:$0xf]
    %v594 = vld [vmem:[#allocation5 + $0x14c] sm:$0xf]
    %v595 = vld [vmem:[#allocation5 + $0x150] sm:$0xf]
    %v596 = vld [vmem:[#allocation5 + $0x154] sm:$0xf]
    %v597 = vld [vmem:[#allocation5 + $0x158] sm:$0xf]
    %v598 = vld [vmem:[#allocation5 + $0x15c] sm:$0xf]
    %v599 = vld [vmem:[#allocation5 + $0x160] sm:$0xf]
    %v600 = vld [vmem:[#allocation5 + $0x164] sm:$0xf]
    %v601 = vld [vmem:[#allocation5 + $0x168] sm:$0xf]
    %v602 = vld [vmem:[#allocation5 + $0x16c] sm:$0xf]
    %v603 = vld [vmem:[#allocation5 + $0x170] sm:$0xf]
    %v604 = vld [vmem:[#allocation5 + $0x174] sm:$0xf]
    %v605 = vld [vmem:[#allocation5 + $0x178] sm:$0xf]
    %v606 = vld [vmem:[#allocation5 + $0x17c] sm:$0xf]
    %v607 = vld [vmem:[#allocation7] sm:$0x1]
    %v609 = vperm.slane %v607, 0
    %v707 = vunpack.c.l.b16 %v511
    %v708 = vunpack.c.l.b16 %v512
    %v709 = vunpack.c.l.b16 %v513
    %v710 = vunpack.c.l.b16 %v514
    %v711 = vunpack.c.l.b16 %v515
    %v712 = vunpack.c.l.b16 %v516
    %v713 = vunpack.c.l.b16 %v517
    %v714 = vunpack.c.l.b16 %v518
    %v715 = vunpack.c.l.b16 %v519
    %v716 = vunpack.c.l.b16 %v520
    %v717 = vunpack.c.l.b16 %v521
    %v718 = vunpack.c.l.b16 %v522
    %v719 = vunpack.c.l.b16 %v523
    %v720 = vunpack.c.l.b16 %v524
    %v721 = vunpack.c.l.b16 %v525
    %v722 = vunpack.c.l.b16 %v526
    %v723 = vunpack.c.l.b16 %v527
    %v724 = vunpack.c.l.b16 %v528
    %v725 = vunpack.c.l.b16 %v529
    %v726 = vunpack.c.l.b16 %v530
    %v727 = vunpack.c.l.b16 %v531
    %v728 = vunpack.c.l.b16 %v532
    %v729 = vunpack.c.l.b16 %v533
    %v730 = vunpack.c.l.b16 %v534
    %v731 = vunpack.c.l.b16 %v535
    %v732 = vunpack.c.l.b16 %v536
    %v733 = vunpack.c.l.b16 %v537
    %v734 = vunpack.c.l.b16 %v538
    %v735 = vunpack.c.l.b16 %v539
    %v736 = vunpack.c.l.b16 %v540
    %v737 = vunpack.c.l.b16 %v541
    %v738 = vunpack.c.l.b16 %v542
    %v739 = vunpack.c.l.b16 %v543
    %v740 = vunpack.c.l.b16 %v544
    %v741 = vunpack.c.l.b16 %v545
    %v742 = vunpack.c.l.b16 %v546
    %v743 = vunpack.c.l.b16 %v547
    %v744 = vunpack.c.l.b16 %v548
    %v745 = vunpack.c.l.b16 %v549
    %v746 = vunpack.c.l.b16 %v550
    %v747 = vunpack.c.l.b16 %v551
    %v748 = vunpack.c.l.b16 %v552
    %v749 = vunpack.c.l.b16 %v553
    %v750 = vunpack.c.l.b16 %v554
    %v751 = vunpack.c.l.b16 %v555
    %v752 = vunpack.c.l.b16 %v556
    %v753 = vunpack.c.l.b16 %v557
    %v754 = vunpack.c.l.b16 %v558
    %v755 = vunpack.c.l.b16 %v559
    %v756 = vunpack.c.l.b16 %v560
    %v757 = vunpack.c.l.b16 %v561
    %v758 = vunpack.c.l.b16 %v562
    %v759 = vunpack.c.l.b16 %v563
    %v760 = vunpack.c.l.b16 %v564
    %v761 = vunpack.c.l.b16 %v565
    %v762 = vunpack.c.l.b16 %v566
    %v763 = vunpack.c.l.b16 %v567
    %v764 = vunpack.c.l.b16 %v568
    %v765 = vunpack.c.l.b16 %v569
    %v766 = vunpack.c.l.b16 %v570
    %v767 = vunpack.c.l.b16 %v571
    %v768 = vunpack.c.l.b16 %v572
    %v769 = vunpack.c.l.b16 %v573
    %v770 = vunpack.c.l.b16 %v574
    %v771 = vunpack.c.l.b16 %v575
    %v772 = vunpack.c.l.b16 %v576
    %v773 = vunpack.c.l.b16 %v577
    %v774 = vunpack.c.l.b16 %v578
    %v775 = vunpack.c.l.b16 %v579
    %v776 = vunpack.c.l.b16 %v580
    %v777 = vunpack.c.l.b16 %v581
    %v778 = vunpack.c.l.b16 %v582
    %v779 = vunpack.c.l.b16 %v583
    %v780 = vunpack.c.l.b16 %v584
    %v781 = vunpack.c.l.b16 %v585
    %v782 = vunpack.c.l.b16 %v586
    %v783 = vunpack.c.l.b16 %v587
    %v784 = vunpack.c.l.b16 %v588
    %v785 = vunpack.c.l.b16 %v589
    %v786 = vunpack.c.l.b16 %v590
    %v787 = vunpack.c.l.b16 %v591
    %v788 = vunpack.c.l.b16 %v592
    %v789 = vunpack.c.l.b16 %v593
    %v790 = vunpack.c.l.b16 %v594
    %v791 = vunpack.c.l.b16 %v595
    %v792 = vunpack.c.l.b16 %v596
    %v793 = vunpack.c.l.b16 %v597
    %v794 = vunpack.c.l.b16 %v598
    %v795 = vunpack.c.l.b16 %v599
    %v796 = vunpack.c.l.b16 %v600
    %v797 = vunpack.c.l.b16 %v601
    %v798 = vunpack.c.l.b16 %v602
    %v799 = vunpack.c.l.b16 %v603
    %v800 = vunpack.c.l.b16 %v604
    %v801 = vunpack.c.l.b16 %v605
    %v802 = vunpack.c.l.b16 %v606
    %v803 = vpack.c.b16 %v708, %v707
    %v804 = vpack.c.b16 %v710, %v709
    %v805 = vpack.c.b16 %v712, %v711
    %v806 = vpack.c.b16 %v714, %v713
    %v807 = vpack.c.b16 %v716, %v715
    %v808 = vpack.c.b16 %v718, %v717
    %v809 = vpack.c.b16 %v720, %v719
    %v810 = vpack.c.b16 %v722, %v721
    %v811 = vpack.c.b16 %v724, %v723
    %v812 = vpack.c.b16 %v726, %v725
    %v813 = vpack.c.b16 %v728, %v727
    %v814 = vpack.c.b16 %v730, %v729
    %v815 = vpack.c.b16 %v732, %v731
    %v816 = vpack.c.b16 %v734, %v733
    %v817 = vpack.c.b16 %v736, %v735
    %v818 = vpack.c.b16 %v738, %v737
    %v819 = vpack.c.b16 %v740, %v739
    %v820 = vpack.c.b16 %v742, %v741
    %v821 = vpack.c.b16 %v744, %v743
    %v822 = vpack.c.b16 %v746, %v745
    %v823 = vpack.c.b16 %v748, %v747
    %v824 = vpack.c.b16 %v750, %v749
    %v825 = vpack.c.b16 %v752, %v751
    %v826 = vpack.c.b16 %v754, %v753
    %v827 = vpack.c.b16 %v756, %v755
    %v828 = vpack.c.b16 %v758, %v757
    %v829 = vpack.c.b16 %v760, %v759
    %v830 = vpack.c.b16 %v762, %v761
    %v831 = vpack.c.b16 %v764, %v763
    %v832 = vpack.c.b16 %v766, %v765
    %v833 = vpack.c.b16 %v768, %v767
    %v834 = vpack.c.b16 %v770, %v769
    %v835 = vpack.c.b16 %v772, %v771
    %v836 = vpack.c.b16 %v774, %v773
    %v837 = vpack.c.b16 %v776, %v775
    %v838 = vpack.c.b16 %v778, %v777
    %v839 = vpack.c.b16 %v780, %v779
    %v840 = vpack.c.b16 %v782, %v781
    %v841 = vpack.c.b16 %v784, %v783
    %v842 = vpack.c.b16 %v786, %v785
    %v843 = vpack.c.b16 %v788, %v787
    %v844 = vpack.c.b16 %v790, %v789
    %v845 = vpack.c.b16 %v792, %v791
    %v846 = vpack.c.b16 %v794, %v793
    %v847 = vpack.c.b16 %v796, %v795
    %v848 = vpack.c.b16 %v798, %v797
    %v849 = vpack.c.b16 %v800, %v799
    %v850 = vpack.c.b16 %v802, %v801
    %899 = vmatpush.bf16.msra.mxu0 %v810
    %900 = vmatpush.bf16.msra.mxu0 %v809
    %901 = vmatpush.bf16.msra.mxu0 %v808
    %902 = vmatpush.bf16.msra.mxu0 %v807
    %903 = vmatpush.bf16.msra.mxu0 %v806
    %904 = vmatpush.bf16.msra.mxu0 %v805
    %905 = vmatpush.bf16.msra.mxu0 %v804
    %906 = vmatpush.bf16.msra.mxu0 %v803
    %907 = vmatmul.bf16.gmra.mxu0 %v487
    %v908 = vpop.f32.mrf.mxu0
    %v909 = vadd.f32 %v609, %v908
    %v910 = vpop.f32.mrf.mxu0
    %v911 = vadd.f32 %v609, %v910
    %912 = vmatmul.bf16.gmra.mxu0 %v493
    %v913 = vpop.f32.mrf.mxu0
    %v914 = vadd.f32 %v609, %v913
    %v915 = vpop.f32.mrf.mxu0
    %v916 = vadd.f32 %v609, %v915
    %917 = vmatmul.bf16.gmra.mxu0 %v499
    %v918 = vpop.f32.mrf.mxu0
    %v919 = vadd.f32 %v609, %v918
    %v920 = vpop.f32.mrf.mxu0
    %v921 = vadd.f32 %v609, %v920
    %922 = vmatmul.bf16.gmra.mxu0 %v505
    %v923 = vpop.f32.mrf.mxu0
    %v924 = vadd.f32 %v609, %v923
    %v925 = vpop.f32.mrf.mxu0
    %v926 = vadd.f32 %v609, %v925
    %927 = vdwg.mxu0
    %928 = vmatpush.bf16.msra.mxu0 %v818
    %929 = vmatpush.bf16.msra.mxu0 %v817
    %930 = vmatpush.bf16.msra.mxu0 %v816
    %931 = vmatpush.bf16.msra.mxu0 %v815
    %932 = vmatpush.bf16.msra.mxu0 %v814
    %933 = vmatpush.bf16.msra.mxu0 %v813
    %934 = vmatpush.bf16.msra.mxu0 %v812
    %935 = vmatpush.bf16.msra.mxu0 %v811
    %936 = vmatmul.bf16.gmra.mxu0 %v488
    %v937 = vpop.f32.mrf.mxu0
    %v938 = vadd.f32 %v909, %v937
    %v939 = vpop.f32.mrf.mxu0
    %v940 = vadd.f32 %v911, %v939
    %941 = vmatmul.bf16.gmra.mxu0 %v494
    %v942 = vpop.f32.mrf.mxu0
    %v943 = vadd.f32 %v914, %v942
    %v944 = vpop.f32.mrf.mxu0
    %v945 = vadd.f32 %v916, %v944
    %946 = vmatmul.bf16.gmra.mxu0 %v500
    %v947 = vpop.f32.mrf.mxu0
    %v948 = vadd.f32 %v919, %v947
    %v949 = vpop.f32.mrf.mxu0
    %v950 = vadd.f32 %v921, %v949
    %951 = vmatmul.bf16.gmra.mxu0 %v506
    %v952 = vpop.f32.mrf.mxu0
    %v953 = vadd.f32 %v924, %v952
    %v954 = vpop.f32.mrf.mxu0
    %v955 = vadd.f32 %v926, %v954
    %956 = vdwg.mxu0
    %957 = vmatpush.bf16.msra.mxu0 %v826
    %958 = vmatpush.bf16.msra.mxu0 %v825
    %959 = vmatpush.bf16.msra.mxu0 %v824
    %960 = vmatpush.bf16.msra.mxu0 %v823
    %961 = vmatpush.bf16.msra.mxu0 %v822
    %962 = vmatpush.bf16.msra.mxu0 %v821
    %963 = vmatpush.bf16.msra.mxu0 %v820
    %964 = vmatpush.bf16.msra.mxu0 %v819
    %965 = vmatmul.bf16.gmra.mxu0 %v489
    %v966 = vpop.f32.mrf.mxu0
    %v967 = vadd.f32 %v938, %v966
    %v968 = vpop.f32.mrf.mxu0
    %v969 = vadd.f32 %v940, %v968
    %970 = vmatmul.bf16.gmra.mxu0 %v495
    %v971 = vpop.f32.mrf.mxu0
    %v972 = vadd.f32 %v943, %v971
    %v973 = vpop.f32.mrf.mxu0
    %v974 = vadd.f32 %v945, %v973
    %975 = vmatmul.bf16.gmra.mxu0 %v501
    %v976 = vpop.f32.mrf.mxu0
    %v977 = vadd.f32 %v948, %v976
    %v978 = vpop.f32.mrf.mxu0
    %v979 = vadd.f32 %v950, %v978
    %980 = vmatmul.bf16.gmra.mxu0 %v507
    %v981 = vpop.f32.mrf.mxu0
    %v982 = vadd.f32 %v953, %v981
    %v983 = vpop.f32.mrf.mxu0
    %v984 = vadd.f32 %v955, %v983
    %985 = vdwg.mxu0
    %986 = vmatpush.bf16.msra.mxu0 %v834
    %987 = vmatpush.bf16.msra.mxu0 %v833
    %988 = vmatpush.bf16.msra.mxu0 %v832
    %989 = vmatpush.bf16.msra.mxu0 %v831
    %990 = vmatpush.bf16.msra.mxu0 %v830
    %991 = vmatpush.bf16.msra.mxu0 %v829
    %992 = vmatpush.bf16.msra.mxu0 %v828
    %993 = vmatpush.bf16.msra.mxu0 %v827
    %994 = vmatmul.bf16.gmra.mxu0 %v490
    %v995 = vpop.f32.mrf.mxu0
    %v996 = vadd.f32 %v967, %v995
    %v997 = vpop.f32.mrf.mxu0
    %v998 = vadd.f32 %v969, %v997
    %999 = vmatmul.bf16.gmra.mxu0 %v496
    %v1000 = vpop.f32.mrf.mxu0
    %v1001 = vadd.f32 %v972, %v1000
    %v1002 = vpop.f32.mrf.mxu0
    %v1003 = vadd.f32 %v974, %v1002
    %1004 = vmatmul.bf16.gmra.mxu0 %v502
    %v1005 = vpop.f32.mrf.mxu0
    %v1006 = vadd.f32 %v977, %v1005
    %v1007 = vpop.f32.mrf.mxu0
    %v1008 = vadd.f32 %v979, %v1007
    %1009 = vmatmul.bf16.gmra.mxu0 %v508
    %v1010 = vpop.f32.mrf.mxu0
    %v1011 = vadd.f32 %v982, %v1010
    %v1012 = vpop.f32.mrf.mxu0
    %v1013 = vadd.f32 %v984, %v1012
    %1014 = vdwg.mxu0
    %1015 = vmatpush.bf16.msra.mxu0 %v842
    %1016 = vmatpush.bf16.msra.mxu0 %v841
    %1017 = vmatpush.bf16.msra.mxu0 %v840
    %1018 = vmatpush.bf16.msra.mxu0 %v839
    %1019 = vmatpush.bf16.msra.mxu0 %v838
    %1020 = vmatpush.bf16.msra.mxu0 %v837
    %1021 = vmatpush.bf16.msra.mxu0 %v836
    %1022 = vmatpush.bf16.msra.mxu0 %v835
    %1023 = vmatmul.bf16.gmra.mxu0 %v491
    %v1024 = vpop.f32.mrf.mxu0
    %v1025 = vadd.f32 %v996, %v1024
    %v1026 = vpop.f32.mrf.mxu0
    %v1027 = vadd.f32 %v998, %v1026
    %1028 = vmatmul.bf16.gmra.mxu0 %v497
    %v1029 = vpop.f32.mrf.mxu0
    %v1030 = vadd.f32 %v1001, %v1029
    %v1031 = vpop.f32.mrf.mxu0
    %v1032 = vadd.f32 %v1003, %v1031
    %1033 = vmatmul.bf16.gmra.mxu0 %v503
    %v1034 = vpop.f32.mrf.mxu0
    %v1035 = vadd.f32 %v1006, %v1034
    %v1036 = vpop.f32.mrf.mxu0
    %v1037 = vadd.f32 %v1008, %v1036
    %1038 = vmatmul.bf16.gmra.mxu0 %v509
    %v1039 = vpop.f32.mrf.mxu0
    %v1040 = vadd.f32 %v1011, %v1039
    %v1041 = vpop.f32.mrf.mxu0
    %v1042 = vadd.f32 %v1013, %v1041
    %1043 = vdwg.mxu0
    %1044 = vmatpush.bf16.msra.mxu0 %v850
    %1045 = vmatpush.bf16.msra.mxu0 %v849
    %1046 = vmatpush.bf16.msra.mxu0 %v848
    %1047 = vmatpush.bf16.msra.mxu0 %v847
    %1048 = vmatpush.bf16.msra.mxu0 %v846
    %1049 = vmatpush.bf16.msra.mxu0 %v845
    %1050 = vmatpush.bf16.msra.mxu0 %v844
    %1051 = vmatpush.bf16.msra.mxu0 %v843
    %1052 = vmatmul.bf16.gmra.mxu0 %v492
    %v1053 = vpop.f32.mrf.mxu0
    %v1054 = vadd.f32 %v1025, %v1053
    %v1055 = vpop.f32.mrf.mxu0
    %v1056 = vadd.f32 %v1027, %v1055
    %1057 = vmatmul.bf16.gmra.mxu0 %v498
    %v1058 = vpop.f32.mrf.mxu0
    %v1059 = vadd.f32 %v1030, %v1058
    %v1060 = vpop.f32.mrf.mxu0
    %v1061 = vadd.f32 %v1032, %v1060
    %1062 = vmatmul.bf16.gmra.mxu0 %v504
    %v1063 = vpop.f32.mrf.mxu0
    %v1064 = vadd.f32 %v1035, %v1063
    %v1065 = vpop.f32.mrf.mxu0
    %v1066 = vadd.f32 %v1037, %v1065
    %1067 = vmatmul.bf16.gmra.mxu0 %v510
    %v1068 = vpop.f32.mrf.mxu0
    %v1069 = vadd.f32 %v1040, %v1068
    %v1070 = vpop.f32.mrf.mxu0
    %v1071 = vadd.f32 %v1042, %v1070
    %1072 = vdwg.mxu0
    %v1073 = vmax.f32 %v1054, 0.0
    %v1074 = vmax.f32 %v1056, 0.0
    %v1075 = vmax.f32 %v1059, 0.0
    %v1076 = vmax.f32 %v1061, 0.0
    %v1077 = vmax.f32 %v1064, 0.0
    %v1078 = vmax.f32 %v1066, 0.0
    %v1079 = vmax.f32 %v1069, 0.0
    %v1080 = vmax.f32 %v1071, 0.0
    %v1081 = vpack.c.bf16 %v1074, %v1073
    %v1082 = vpack.c.bf16 %v1076, %v1075
    %v1083 = vpack.c.bf16 %v1078, %v1077
    %v1084 = vpack.c.bf16 %v1080, %v1079
    %v1085 = vld [vmem:[#allocation8] sm:$0xff]
    %v1086 = vld [vmem:[#allocation8 + $0x8] sm:$0xf]
    %v1087 = vld [vmem:[#allocation8 + $0xc] sm:$0xff]
    %v1088 = vld [vmem:[#allocation8 + $0x14] sm:$0xf]
    %v1089 = vld [vmem:[#allocation8 + $0x18] sm:$0xff]
    %v1090 = vld [vmem:[#allocation8 + $0x20] sm:$0xf]
    %v1091 = vld [vmem:[#allocation8 + $0x24] sm:$0xff]
    %v1092 = vld [vmem:[#allocation8 + $0x2c] sm:$0xf]
    %v1093 = vld [vmem:[#allocation8 + $0x30] sm:$0xff]
    %v1094 = vld [vmem:[#allocation8 + $0x38] sm:$0xf]
    %v1095 = vld [vmem:[#allocation8 + $0x3c] sm:$0xff]
    %v1096 = vld [vmem:[#allocation8 + $0x44] sm:$0xf]
    %v1097 = vld [vmem:[#allocation8 + $0x48] sm:$0xff]
    %v1098 = vld [vmem:[#allocation8 + $0x50] sm:$0xf]
    %v1099 = vld [vmem:[#allocation8 + $0x54] sm:$0xff]
    %v1100 = vld [vmem:[#allocation8 + $0x5c] sm:$0xf]
    %v1101 = vld [vmem:[#allocation8 + $0x60] sm:$0xff]
    %v1102 = vld [vmem:[#allocation8 + $0x68] sm:$0xf]
    %v1103 = vld [vmem:[#allocation8 + $0x6c] sm:$0xff]
    %v1104 = vld [vmem:[#allocation8 + $0x74] sm:$0xf]
    %v1105 = vld [vmem:[#allocation8 + $0x78] sm:$0xff]
    %v1106 = vld [vmem:[#allocation8 + $0x80] sm:$0xf]
    %v1107 = vld [vmem:[#allocation8 + $0x84] sm:$0xff]
    %v1108 = vld [vmem:[#allocation8 + $0x8c] sm:$0xf]
    %v1109 = vld [vmem:[#allocation8 + $0x90] sm:$0xff]
    %v1110 = vld [vmem:[#allocation8 + $0x98] sm:$0xf]
    %v1111 = vld [vmem:[#allocation8 + $0x9c] sm:$0xff]
    %v1112 = vld [vmem:[#allocation8 + $0xa4] sm:$0xf]
    %v1113 = vld [vmem:[#allocation8 + $0xa8] sm:$0xff]
    %v1114 = vld [vmem:[#allocation8 + $0xb0] sm:$0xf]
    %v1115 = vld [vmem:[#allocation8 + $0xb4] sm:$0xff]
    %v1116 = vld [vmem:[#allocation8 + $0xbc] sm:$0xf]
    %v1117 = vld [vmem:[%s4] sm:$0x7]
    %v1119 = vperm.slane %v1117, 0
    %v1120 = vperm.slane %v1117, 1
    %v1121 = vperm.slane %v1117, 2
    %v1157 = vunpack.c.l.b16 %v1085
    %v1158 = vunpack.c.h.b16 %v1085
    %v1159 = vunpack.c.l.b16 %v1086
    %v1160 = vunpack.c.l.b16 %v1087
    %v1161 = vunpack.c.h.b16 %v1087
    %v1162 = vunpack.c.l.b16 %v1088
    %v1163 = vunpack.c.l.b16 %v1089
    %v1164 = vunpack.c.h.b16 %v1089
    %v1165 = vunpack.c.l.b16 %v1090
    %v1166 = vunpack.c.l.b16 %v1091
    %v1167 = vunpack.c.h.b16 %v1091
    %v1168 = vunpack.c.l.b16 %v1092
    %v1169 = vunpack.c.l.b16 %v1093
    %v1170 = vunpack.c.h.b16 %v1093
    %v1171 = vunpack.c.l.b16 %v1094
    %v1172 = vunpack.c.l.b16 %v1095
    %v1173 = vunpack.c.h.b16 %v1095
    %v1174 = vunpack.c.l.b16 %v1096
    %v1175 = vunpack.c.l.b16 %v1097
    %v1176 = vunpack.c.h.b16 %v1097
    %v1177 = vunpack.c.l.b16 %v1098
    %v1178 = vunpack.c.l.b16 %v1099
    %v1179 = vunpack.c.h.b16 %v1099
    %v1180 = vunpack.c.l.b16 %v1100
    %v1181 = vunpack.c.l.b16 %v1101
    %v1182 = vunpack.c.h.b16 %v1101
    %v1183 = vunpack.c.l.b16 %v1102
    %v1184 = vunpack.c.l.b16 %v1103
    %v1185 = vunpack.c.h.b16 %v1103
    %v1186 = vunpack.c.l.b16 %v1104
    %v1187 = vunpack.c.l.b16 %v1105
    %v1188 = vunpack.c.h.b16 %v1105
    %v1189 = vunpack.c.l.b16 %v1106
    %v1190 = vunpack.c.l.b16 %v1107
    %v1191 = vunpack.c.h.b16 %v1107
    %v1192 = vunpack.c.l.b16 %v1108
    %v1193 = vunpack.c.l.b16 %v1109
    %v1194 = vunpack.c.h.b16 %v1109
    %v1195 = vunpack.c.l.b16 %v1110
    %v1196 = vunpack.c.l.b16 %v1111
    %v1197 = vunpack.c.h.b16 %v1111
    %v1198 = vunpack.c.l.b16 %v1112
    %v1199 = vunpack.c.l.b16 %v1113
    %v1200 = vunpack.c.h.b16 %v1113
    %v1201 = vunpack.c.l.b16 %v1114
    %v1202 = vunpack.c.l.b16 %v1115
    %v1203 = vunpack.c.h.b16 %v1115
    %v1204 = vunpack.c.l.b16 %v1116
    %v1205 = vpack.c.b16 %v1160, %v1157
    %v1206 = vpack.c.b16 %v1161, %v1158
    %v1207 = vpack.c.b16 %v1162, %v1159
    %v1208 = vpack.c.b16 %v1166, %v1163
    %v1209 = vpack.c.b16 %v1167, %v1164
    %v1210 = vpack.c.b16 %v1168, %v1165
    %v1211 = vpack.c.b16 %v1172, %v1169
    %v1212 = vpack.c.b16 %v1173, %v1170
    %v1213 = vpack.c.b16 %v1174, %v1171
    %v1214 = vpack.c.b16 %v1178, %v1175
    %v1215 = vpack.c.b16 %v1179, %v1176
    %v1216 = vpack.c.b16 %v1180, %v1177
    %v1217 = vpack.c.b16 %v1184, %v1181
    %v1218 = vpack.c.b16 %v1185, %v1182
    %v1219 = vpack.c.b16 %v1186, %v1183
    %v1220 = vpack.c.b16 %v1190, %v1187
    %v1221 = vpack.c.b16 %v1191, %v1188
    %v1222 = vpack.c.b16 %v1192, %v1189
    %v1223 = vpack.c.b16 %v1196, %v1193
    %v1224 = vpack.c.b16 %v1197, %v1194
    %v1225 = vpack.c.b16 %v1198, %v1195
    %v1226 = vpack.c.b16 %v1202, %v1199
    %v1227 = vpack.c.b16 %v1203, %v1200
    %v1228 = vpack.c.b16 %v1204, %v1201
    %1253 = vmatpush.bf16.msra.mxu0 %v1226
    %1254 = vmatpush.bf16.msra.mxu0 %v1223
    %1255 = vmatpush.bf16.msra.mxu0 %v1220
    %1256 = vmatpush.bf16.msra.mxu0 %v1217
    %1257 = vmatpush.bf16.msra.mxu0 %v1214
    %1258 = vmatpush.bf16.msra.mxu0 %v1211
    %1259 = vmatpush.bf16.msra.mxu0 %v1208
    %1260 = vmatpush.bf16.msra.mxu0 %v1205
    %1261 = vmatmul.bf16.gmra.mxu0 %v1081
    %v1262 = vpop.f32.mrf.mxu0
    %v1263 = vadd.f32 %v1119, %v1262
    %v1264 = vpop.f32.mrf.mxu0
    %v1265 = vadd.f32 %v1119, %v1264
    %1266 = vmatmul.bf16.gmra.mxu0 %v1082
    %v1267 = vpop.f32.mrf.mxu0
    %v1268 = vadd.f32 %v1119, %v1267
    %v1269 = vpop.f32.mrf.mxu0
    %v1270 = vadd.f32 %v1119, %v1269
    %1271 = vmatmul.bf16.gmra.mxu0 %v1083
    %v1272 = vpop.f32.mrf.mxu0
    %v1273 = vadd.f32 %v1119, %v1272
    %v1274 = vpop.f32.mrf.mxu0
    %v1275 = vadd.f32 %v1119, %v1274
    %1276 = vmatmul.bf16.gmra.mxu0 %v1084
    %v1277 = vpop.f32.mrf.mxu0
    %v1278 = vadd.f32 %v1119, %v1277
    %v1279 = vpop.f32.mrf.mxu0
    %v1280 = vadd.f32 %v1119, %v1279
    %1281 = vdwg.mxu0
    %1282 = vmatpush.bf16.msra.mxu0 %v1227
    %1283 = vmatpush.bf16.msra.mxu0 %v1224
    %1284 = vmatpush.bf16.msra.mxu0 %v1221
    %1285 = vmatpush.bf16.msra.mxu0 %v1218
    %1286 = vmatpush.bf16.msra.mxu0 %v1215
    %1287 = vmatpush.bf16.msra.mxu0 %v1212
    %1288 = vmatpush.bf16.msra.mxu0 %v1209
    %1289 = vmatpush.bf16.msra.mxu0 %v1206
    %1290 = vmatmul.bf16.gmra.mxu0 %v1081
    %v1291 = vpop.f32.mrf.mxu0
    %v1292 = vadd.f32 %v1120, %v1291
    %v1293 = vpop.f32.mrf.mxu0
    %v1294 = vadd.f32 %v1120, %v1293
    %1295 = vmatmul.bf16.gmra.mxu0 %v1082
    %v1296 = vpop.f32.mrf.mxu0
    %v1297 = vadd.f32 %v1120, %v1296
    %v1298 = vpop.f32.mrf.mxu0
    %v1299 = vadd.f32 %v1120, %v1298
    %1300 = vmatmul.bf16.gmra.mxu0 %v1083
    %v1301 = vpop.f32.mrf.mxu0
    %v1302 = vadd.f32 %v1120, %v1301
    %v1303 = vpop.f32.mrf.mxu0
    %v1304 = vadd.f32 %v1120, %v1303
    %1305 = vmatmul.bf16.gmra.mxu0 %v1084
    %v1306 = vpop.f32.mrf.mxu0
    %v1307 = vadd.f32 %v1120, %v1306
    %v1308 = vpop.f32.mrf.mxu0
    %v1309 = vadd.f32 %v1120, %v1308
    %1310 = vdwg.mxu0
    %1311 = vmatpush.bf16.msra.mxu0 %v1228
    %1312 = vmatpush.bf16.msra.mxu0 %v1225
    %1313 = vmatpush.bf16.msra.mxu0 %v1222
    %1314 = vmatpush.bf16.msra.mxu0 %v1219
    %1315 = vmatpush.bf16.msra.mxu0 %v1216
    %1316 = vmatpush.bf16.msra.mxu0 %v1213
    %1317 = vmatpush.bf16.msra.mxu0 %v1210
    %1318 = vmatpush.bf16.msra.mxu0 %v1207
    %1319 = vmatmul.bf16.gmra.mxu0 %v1081
    %v1320 = vpop.f32.mrf.mxu0
    %v1321 = vadd.f32 %v1121, %v1320
    %v1322 = vpop.f32.mrf.mxu0
    %v1323 = vadd.f32 %v1121, %v1322
    %1324 = vmatmul.bf16.gmra.mxu0 %v1082
    %v1325 = vpop.f32.mrf.mxu0
    %v1326 = vadd.f32 %v1121, %v1325
    %v1327 = vpop.f32.mrf.mxu0
    %v1328 = vadd.f32 %v1121, %v1327
    %1329 = vmatmul.bf16.gmra.mxu0 %v1083
    %v1330 = vpop.f32.mrf.mxu0
    %v1331 = vadd.f32 %v1121, %v1330
    %v1332 = vpop.f32.mrf.mxu0
    %v1333 = vadd.f32 %v1121, %v1332
    %1334 = vmatmul.bf16.gmra.mxu0 %v1084
    %v1335 = vpop.f32.mrf.mxu0
    %v1336 = vadd.f32 %v1121, %v1335
    %v1337 = vpop.f32.mrf.mxu0
    %v1338 = vadd.f32 %v1121, %v1337
    %1339 = vdwg.mxu0
    %v1340 = vxor.u32 %v1263, 2147483648
    %v1341 = vxor.u32 %v1265, 2147483648
    %v1342 = vxor.u32 %v1268, 2147483648
    %v1343 = vxor.u32 %v1270, 2147483648
    %v1344 = vxor.u32 %v1273, 2147483648
    %v1345 = vxor.u32 %v1275, 2147483648
    %v1346 = vxor.u32 %v1278, 2147483648
    %v1347 = vxor.u32 %v1280, 2147483648
    %v1348 = vmul.f32 %v1340, 1.442695
    %v1349 = vpow.pop %v1348
    %v1350 = vmul.f32 %v1341, 1.442695
    %v1351 = vpow.pop %v1350
    %v1352 = vmul.f32 %v1342, 1.442695
    %v1353 = vpow.pop %v1352
    %v1354 = vmul.f32 %v1343, 1.442695
    %v1355 = vpow.pop %v1354
    %v1356 = vmul.f32 %v1344, 1.442695
    %v1357 = vpow.pop %v1356
    %v1358 = vmul.f32 %v1345, 1.442695
    %v1359 = vpow.pop %v1358
    %v1360 = vmul.f32 %v1346, 1.442695
    %v1361 = vpow.pop %v1360
    %v1362 = vmul.f32 %v1347, 1.442695
    %v1363 = vpow.pop %v1362
    %v1364 = vadd.f32 %v1349, 1.0
    %v1365 = vadd.f32 %v1351, 1.0
    %v1366 = vadd.f32 %v1353, 1.0
    %v1367 = vadd.f32 %v1355, 1.0
    %v1368 = vadd.f32 %v1357, 1.0
    %v1369 = vadd.f32 %v1359, 1.0
    %v1370 = vadd.f32 %v1361, 1.0
    %v1371 = vadd.f32 %v1363, 1.0
    %v1372 = vrcp.pop %v1364
    %v1373 = vmul.f32 %v1364, %v1372
    %v1374 = vsub.f32 1.0, %v1373
    %v1375 = vmul.f32 %v1372, %v1374
    %v1376 = vadd.f32 %v1372, %v1375
    %vm1377 = vweird.f32 %v1364
    %vm1378 = vweird.f32 %v1372
    %vm1379 = vmor %vm1377, %vm1378
    %v1380 = vsel %vm1379, %v1372, %v1376
    %v1381 = vand.u32 2147483647, %v1364
    %vm1382 = vcmp.eq.f32.partialorder %v1381, 8.507059e+37
    %v1383 = vand.u32 %v1364, 2147483648
    %v1384 = vor.u32 1.1754944e-38, %v1383
    %v1385 = vsel %vm1382, %v1384, %v1380
    %v1386 = vmul.f32 1.0, %v1385
    %v1387 = vrcp.pop %v1365
    %v1388 = vmul.f32 %v1365, %v1387
    %v1389 = vsub.f32 1.0, %v1388
    %v1390 = vmul.f32 %v1387, %v1389
    %v1391 = vadd.f32 %v1387, %v1390
    %vm1392 = vweird.f32 %v1365
    %vm1393 = vweird.f32 %v1387
    %vm1394 = vmor %vm1392, %vm1393
    %v1395 = vsel %vm1394, %v1387, %v1391
    %v1396 = vand.u32 2147483647, %v1365
    %vm1397 = vcmp.eq.f32.partialorder %v1396, 8.507059e+37
    %v1398 = vand.u32 %v1365, 2147483648
    %v1399 = vor.u32 1.1754944e-38, %v1398
    %v1400 = vsel %vm1397, %v1399, %v1395
    %v1401 = vmul.f32 1.0, %v1400
    %v1402 = vrcp.pop %v1366
    %v1403 = vmul.f32 %v1366, %v1402
    %v1404 = vsub.f32 1.0, %v1403
    %v1405 = vmul.f32 %v1402, %v1404
    %v1406 = vadd.f32 %v1402, %v1405
    %vm1407 = vweird.f32 %v1366
    %vm1408 = vweird.f32 %v1402
    %vm1409 = vmor %vm1407, %vm1408
    %v1410 = vsel %vm1409, %v1402, %v1406
    %v1411 = vand.u32 2147483647, %v1366
    %vm1412 = vcmp.eq.f32.partialorder %v1411, 8.507059e+37
    %v1413 = vand.u32 %v1366, 2147483648
    %v1414 = vor.u32 1.1754944e-38, %v1413
    %v1415 = vsel %vm1412, %v1414, %v1410
    %v1416 = vmul.f32 1.0, %v1415
    %v1417 = vrcp.pop %v1367
    %v1418 = vmul.f32 %v1367, %v1417
    %v1419 = vsub.f32 1.0, %v1418
    %v1420 = vmul.f32 %v1417, %v1419
    %v1421 = vadd.f32 %v1417, %v1420
    %vm1422 = vweird.f32 %v1367
    %vm1423 = vweird.f32 %v1417
    %vm1424 = vmor %vm1422, %vm1423
    %v1425 = vsel %vm1424, %v1417, %v1421
    %v1426 = vand.u32 2147483647, %v1367
    %vm1427 = vcmp.eq.f32.partialorder %v1426, 8.507059e+37
    %v1428 = vand.u32 %v1367, 2147483648
    %v1429 = vor.u32 1.1754944e-38, %v1428
    %v1430 = vsel %vm1427, %v1429, %v1425
    %v1431 = vmul.f32 1.0, %v1430
    %v1432 = vrcp.pop %v1368
    %v1433 = vmul.f32 %v1368, %v1432
    %v1434 = vsub.f32 1.0, %v1433
    %v1435 = vmul.f32 %v1432, %v1434
    %v1436 = vadd.f32 %v1432, %v1435
    %vm1437 = vweird.f32 %v1368
    %vm1438 = vweird.f32 %v1432
    %vm1439 = vmor %vm1437, %vm1438
    %v1440 = vsel %vm1439, %v1432, %v1436
    %v1441 = vand.u32 2147483647, %v1368
    %vm1442 = vcmp.eq.f32.partialorder %v1441, 8.507059e+37
    %v1443 = vand.u32 %v1368, 2147483648
    %v1444 = vor.u32 1.1754944e-38, %v1443
    %v1445 = vsel %vm1442, %v1444, %v1440
    %v1446 = vmul.f32 1.0, %v1445
    %v1447 = vrcp.pop %v1369
    %v1448 = vmul.f32 %v1369, %v1447
    %v1449 = vsub.f32 1.0, %v1448
    %v1450 = vmul.f32 %v1447, %v1449
    %v1451 = vadd.f32 %v1447, %v1450
    %vm1452 = vweird.f32 %v1369
    %vm1453 = vweird.f32 %v1447
    %vm1454 = vmor %vm1452, %vm1453
    %v1455 = vsel %vm1454, %v1447, %v1451
    %v1456 = vand.u32 2147483647, %v1369
    %vm1457 = vcmp.eq.f32.partialorder %v1456, 8.507059e+37
    %v1458 = vand.u32 %v1369, 2147483648
    %v1459 = vor.u32 1.1754944e-38, %v1458
    %v1460 = vsel %vm1457, %v1459, %v1455
    %v1461 = vmul.f32 1.0, %v1460
    %v1462 = vrcp.pop %v1370
    %v1463 = vmul.f32 %v1370, %v1462
    %v1464 = vsub.f32 1.0, %v1463
    %v1465 = vmul.f32 %v1462, %v1464
    %v1466 = vadd.f32 %v1462, %v1465
    %vm1467 = vweird.f32 %v1370
    %vm1468 = vweird.f32 %v1462
    %vm1469 = vmor %vm1467, %vm1468
    %v1470 = vsel %vm1469, %v1462, %v1466
    %v1471 = vand.u32 2147483647, %v1370
    %vm1472 = vcmp.eq.f32.partialorder %v1471, 8.507059e+37
    %v1473 = vand.u32 %v1370, 2147483648
    %v1474 = vor.u32 1.1754944e-38, %v1473
    %v1475 = vsel %vm1472, %v1474, %v1470
    %v1476 = vmul.f32 1.0, %v1475
    %v1477 = vrcp.pop %v1371
    %v1478 = vmul.f32 %v1371, %v1477
    %v1479 = vsub.f32 1.0, %v1478
    %v1480 = vmul.f32 %v1477, %v1479
    %v1481 = vadd.f32 %v1477, %v1480
    %vm1482 = vweird.f32 %v1371
    %vm1483 = vweird.f32 %v1477
    %vm1484 = vmor %vm1482, %vm1483
    %v1485 = vsel %vm1484, %v1477, %v1481
    %v1486 = vand.u32 2147483647, %v1371
    %vm1487 = vcmp.eq.f32.partialorder %v1486, 8.507059e+37
    %v1488 = vand.u32 %v1371, 2147483648
    %v1489 = vor.u32 1.1754944e-38, %v1488
    %v1490 = vsel %vm1487, %v1489, %v1485
    %v1491 = vmul.f32 1.0, %v1490
    %v1492 = vtanh.pop %v1292
    %v1493 = vtanh.pop %v1294
    %v1494 = vtanh.pop %v1297
    %v1495 = vtanh.pop %v1299
    %v1496 = vtanh.pop %v1302
    %v1497 = vtanh.pop %v1304
    %v1498 = vtanh.pop %v1307
    %v1499 = vtanh.pop %v1309
    %v1500 = vxor.u32 %v1321, 2147483648
    %v1501 = vxor.u32 %v1323, 2147483648
    %v1502 = vxor.u32 %v1326, 2147483648
    %v1503 = vxor.u32 %v1328, 2147483648
    %v1504 = vxor.u32 %v1331, 2147483648
    %v1505 = vxor.u32 %v1333, 2147483648
    %v1506 = vxor.u32 %v1336, 2147483648
    %v1507 = vxor.u32 %v1338, 2147483648
    %v1508 = vmul.f32 %v1500, 1.442695
    %v1509 = vpow.pop %v1508
    %v1510 = vmul.f32 %v1501, 1.442695
    %v1511 = vpow.pop %v1510
    %v1512 = vmul.f32 %v1502, 1.442695
    %v1513 = vpow.pop %v1512
    %v1514 = vmul.f32 %v1503, 1.442695
    %v1515 = vpow.pop %v1514
    %v1516 = vmul.f32 %v1504, 1.442695
    %v1517 = vpow.pop %v1516
    %v1518 = vmul.f32 %v1505, 1.442695
    %v1519 = vpow.pop %v1518
    %v1520 = vmul.f32 %v1506, 1.442695
    %v1521 = vpow.pop %v1520
    %v1522 = vmul.f32 %v1507, 1.442695
    %v1523 = vpow.pop %v1522
    %v1524 = vadd.f32 %v1509, 1.0
    %v1525 = vadd.f32 %v1511, 1.0
    %v1526 = vadd.f32 %v1513, 1.0
    %v1527 = vadd.f32 %v1515, 1.0
    %v1528 = vadd.f32 %v1517, 1.0
    %v1529 = vadd.f32 %v1519, 1.0
    %v1530 = vadd.f32 %v1521, 1.0
    %v1531 = vadd.f32 %v1523, 1.0
    %v1532 = vrcp.pop %v1524
    %v1533 = vmul.f32 %v1524, %v1532
    %v1534 = vsub.f32 1.0, %v1533
    %v1535 = vmul.f32 %v1532, %v1534
    %v1536 = vadd.f32 %v1532, %v1535
    %vm1537 = vweird.f32 %v1524
    %vm1538 = vweird.f32 %v1532
    %vm1539 = vmor %vm1537, %vm1538
    %v1540 = vsel %vm1539, %v1532, %v1536
    %v1541 = vand.u32 2147483647, %v1524
    %vm1542 = vcmp.eq.f32.partialorder %v1541, 8.507059e+37
    %v1543 = vand.u32 %v1524, 2147483648
    %v1544 = vor.u32 1.1754944e-38, %v1543
    %v1545 = vsel %vm1542, %v1544, %v1540
    %v1546 = vmul.f32 1.0, %v1545
    %v1547 = vrcp.pop %v1525
    %v1548 = vmul.f32 %v1525, %v1547
    %v1549 = vsub.f32 1.0, %v1548
    %v1550 = vmul.f32 %v1547, %v1549
    %v1551 = vadd.f32 %v1547, %v1550
    %vm1552 = vweird.f32 %v1525
    %vm1553 = vweird.f32 %v1547
    %vm1554 = vmor %vm1552, %vm1553
    %v1555 = vsel %vm1554, %v1547, %v1551
    %v1556 = vand.u32 2147483647, %v1525
    %vm1557 = vcmp.eq.f32.partialorder %v1556, 8.507059e+37
    %v1558 = vand.u32 %v1525, 2147483648
    %v1559 = vor.u32 1.1754944e-38, %v1558
    %v1560 = vsel %vm1557, %v1559, %v1555
    %v1561 = vmul.f32 1.0, %v1560
    %v1562 = vrcp.pop %v1526
    %v1563 = vmul.f32 %v1526, %v1562
    %v1564 = vsub.f32 1.0, %v1563
    %v1565 = vmul.f32 %v1562, %v1564
    %v1566 = vadd.f32 %v1562, %v1565
    %vm1567 = vweird.f32 %v1526
    %vm1568 = vweird.f32 %v1562
    %vm1569 = vmor %vm1567, %vm1568
    %v1570 = vsel %vm1569, %v1562, %v1566
    %v1571 = vand.u32 2147483647, %v1526
    %vm1572 = vcmp.eq.f32.partialorder %v1571, 8.507059e+37
    %v1573 = vand.u32 %v1526, 2147483648
    %v1574 = vor.u32 1.1754944e-38, %v1573
    %v1575 = vsel %vm1572, %v1574, %v1570
    %v1576 = vmul.f32 1.0, %v1575
    %v1577 = vrcp.pop %v1527
    %v1578 = vmul.f32 %v1527, %v1577
    %v1579 = vsub.f32 1.0, %v1578
    %v1580 = vmul.f32 %v1577, %v1579
    %v1581 = vadd.f32 %v1577, %v1580
    %vm1582 = vweird.f32 %v1527
    %vm1583 = vweird.f32 %v1577
    %vm1584 = vmor %vm1582, %vm1583
    %v1585 = vsel %vm1584, %v1577, %v1581
    %v1586 = vand.u32 2147483647, %v1527
    %vm1587 = vcmp.eq.f32.partialorder %v1586, 8.507059e+37
    %v1588 = vand.u32 %v1527, 2147483648
    %v1589 = vor.u32 1.1754944e-38, %v1588
    %v1590 = vsel %vm1587, %v1589, %v1585
    %v1591 = vmul.f32 1.0, %v1590
    %v1592 = vrcp.pop %v1528
    %v1593 = vmul.f32 %v1528, %v1592
    %v1594 = vsub.f32 1.0, %v1593
    %v1595 = vmul.f32 %v1592, %v1594
    %v1596 = vadd.f32 %v1592, %v1595
    %vm1597 = vweird.f32 %v1528
    %vm1598 = vweird.f32 %v1592
    %vm1599 = vmor %vm1597, %vm1598
    %v1600 = vsel %vm1599, %v1592, %v1596
    %v1601 = vand.u32 2147483647, %v1528
    %vm1602 = vcmp.eq.f32.partialorder %v1601, 8.507059e+37
    %v1603 = vand.u32 %v1528, 2147483648
    %v1604 = vor.u32 1.1754944e-38, %v1603
    %v1605 = vsel %vm1602, %v1604, %v1600
    %v1606 = vmul.f32 1.0, %v1605
    %v1607 = vrcp.pop %v1529
    %v1608 = vmul.f32 %v1529, %v1607
    %v1609 = vsub.f32 1.0, %v1608
    %v1610 = vmul.f32 %v1607, %v1609
    %v1611 = vadd.f32 %v1607, %v1610
    %vm1612 = vweird.f32 %v1529
    %vm1613 = vweird.f32 %v1607
    %vm1614 = vmor %vm1612, %vm1613
    %v1615 = vsel %vm1614, %v1607, %v1611
    %v1616 = vand.u32 2147483647, %v1529
    %vm1617 = vcmp.eq.f32.partialorder %v1616, 8.507059e+37
    %v1618 = vand.u32 %v1529, 2147483648
    %v1619 = vor.u32 1.1754944e-38, %v1618
    %v1620 = vsel %vm1617, %v1619, %v1615
    %v1621 = vmul.f32 1.0, %v1620
    %v1622 = vrcp.pop %v1530
    %v1623 = vmul.f32 %v1530, %v1622
    %v1624 = vsub.f32 1.0, %v1623
    %v1625 = vmul.f32 %v1622, %v1624
    %v1626 = vadd.f32 %v1622, %v1625
    %vm1627 = vweird.f32 %v1530
    %vm1628 = vweird.f32 %v1622
    %vm1629 = vmor %vm1627, %vm1628
    %v1630 = vsel %vm1629, %v1622, %v1626
    %v1631 = vand.u32 2147483647, %v1530
    %vm1632 = vcmp.eq.f32.partialorder %v1631, 8.507059e+37
    %v1633 = vand.u32 %v1530, 2147483648
    %v1634 = vor.u32 1.1754944e-38, %v1633
    %v1635 = vsel %vm1632, %v1634, %v1630
    %v1636 = vmul.f32 1.0, %v1635
    %v1637 = vrcp.pop %v1531
    %v1638 = vmul.f32 %v1531, %v1637
    %v1639 = vsub.f32 1.0, %v1638
    %v1640 = vmul.f32 %v1637, %v1639
    %v1641 = vadd.f32 %v1637, %v1640
    %vm1642 = vweird.f32 %v1531
    %vm1643 = vweird.f32 %v1637
    %vm1644 = vmor %vm1642, %vm1643
    %v1645 = vsel %vm1644, %v1637, %v1641
    %v1646 = vand.u32 2147483647, %v1531
    %vm1647 = vcmp.eq.f32.partialorder %v1646, 8.507059e+37
    %v1648 = vand.u32 %v1531, 2147483648
    %v1649 = vor.u32 1.1754944e-38, %v1648
    %v1650 = vsel %vm1647, %v1649, %v1645
    %v1651 = vmul.f32 1.0, %v1650
    %v1652 = vmul.f32 %v1386, %v1492
    %v1653 = vmul.f32 %v1401, %v1493
    %v1654 = vmul.f32 %v1416, %v1494
    %v1655 = vmul.f32 %v1431, %v1495
    %v1656 = vmul.f32 %v1446, %v1496
    %v1657 = vmul.f32 %v1461, %v1497
    %v1658 = vmul.f32 %v1476, %v1498
    %v1659 = vmul.f32 %v1491, %v1499
    %v1660 = vtanh.pop %v1652
    %v1661 = vtanh.pop %v1653
    %v1662 = vtanh.pop %v1654
    %v1663 = vtanh.pop %v1655
    %v1664 = vtanh.pop %v1656
    %v1665 = vtanh.pop %v1657
    %v1666 = vtanh.pop %v1658
    %v1667 = vtanh.pop %v1659
    %v1668 = vmul.f32 %v1546, %v1660
    %v1669 = vmul.f32 %v1561, %v1661
    %v1670 = vmul.f32 %v1576, %v1662
    %v1671 = vmul.f32 %v1591, %v1663
    %v1672 = vmul.f32 %v1606, %v1664
    %v1673 = vmul.f32 %v1621, %v1665
    %v1674 = vmul.f32 %v1636, %v1666
    %v1675 = vmul.f32 %v1651, %v1667
    %v1676 = vpack.c.bf16 %v1669, %v1668
    %v1677 = vpack.c.bf16 %v1671, %v1670
    %v1678 = vpack.c.bf16 %v1673, %v1672
    %v1679 = vpack.c.bf16 %v1675, %v1674
    %v1680 = vld [vmem:[#allocation10] sm:$0xf]
    %v1681 = vld [vmem:[#allocation10 + $0x4] sm:$0xf]
    %v1682 = vld [vmem:[#allocation10 + $0x8] sm:$0xf]
    %v1683 = vld [vmem:[#allocation10 + $0xc] sm:$0xf]
    %v1684 = vld [vmem:[#allocation10 + $0x10] sm:$0xf]
    %v1685 = vld [vmem:[#allocation10 + $0x14] sm:$0xf]
    %v1686 = vld [vmem:[#allocation10 + $0x18] sm:$0xf]
    %v1687 = vld [vmem:[#allocation10 + $0x1c] sm:$0xf]
    %v1688 = vld [vmem:[#allocation10 + $0x20] sm:$0xf]
    %v1689 = vld [vmem:[#allocation10 + $0x24] sm:$0xf]
    %v1690 = vld [vmem:[#allocation10 + $0x28] sm:$0xf]
    %v1691 = vld [vmem:[#allocation10 + $0x2c] sm:$0xf]
    %v1692 = vld [vmem:[#allocation10 + $0x30] sm:$0xf]
    %v1693 = vld [vmem:[#allocation10 + $0x34] sm:$0xf]
    %v1694 = vld [vmem:[#allocation10 + $0x38] sm:$0xf]
    %v1695 = vld [vmem:[#allocation10 + $0x3c] sm:$0xf]
    %v1696 = vld [vmem:[%s6] sm:$0x1]
    %v1698 = vperm.slane %v1696, 0
    %v1716 = vunpack.c.l.b16 %v1680
    %v1717 = vunpack.c.l.b16 %v1681
    %v1718 = vunpack.c.l.b16 %v1682
    %v1719 = vunpack.c.l.b16 %v1683
    %v1720 = vunpack.c.l.b16 %v1684
    %v1721 = vunpack.c.l.b16 %v1685
    %v1722 = vunpack.c.l.b16 %v1686
    %v1723 = vunpack.c.l.b16 %v1687
    %v1724 = vunpack.c.l.b16 %v1688
    %v1725 = vunpack.c.l.b16 %v1689
    %v1726 = vunpack.c.l.b16 %v1690
    %v1727 = vunpack.c.l.b16 %v1691
    %v1728 = vunpack.c.l.b16 %v1692
    %v1729 = vunpack.c.l.b16 %v1693
    %v1730 = vunpack.c.l.b16 %v1694
    %v1731 = vunpack.c.l.b16 %v1695
    %v1732 = vpack.c.b16 %v1717, %v1716
    %v1733 = vpack.c.b16 %v1719, %v1718
    %v1734 = vpack.c.b16 %v1721, %v1720
    %v1735 = vpack.c.b16 %v1723, %v1722
    %v1736 = vpack.c.b16 %v1725, %v1724
    %v1737 = vpack.c.b16 %v1727, %v1726
    %v1738 = vpack.c.b16 %v1729, %v1728
    %v1739 = vpack.c.b16 %v1731, %v1730
    %1748 = vmatpush.bf16.msra.mxu0 %v1739
    %1749 = vmatpush.bf16.msra.mxu0 %v1738
    %1750 = vmatpush.bf16.msra.mxu0 %v1737
    %1751 = vmatpush.bf16.msra.mxu0 %v1736
    %1752 = vmatpush.bf16.msra.mxu0 %v1735
    %1753 = vmatpush.bf16.msra.mxu0 %v1734
    %1754 = vmatpush.bf16.msra.mxu0 %v1733
    %1755 = vmatpush.bf16.msra.mxu0 %v1732
    %1756 = vmatmul.bf16.gmra.mxu0 %v1676
    %v1757 = vpop.f32.mrf.mxu0
    %v1758 = vadd.f32 %v1698, %v1757
    %v1759 = vpop.f32.mrf.mxu0
    %v1760 = vadd.f32 %v1698, %v1759
    %1761 = vmatmul.bf16.gmra.mxu0 %v1677
    %v1762 = vpop.f32.mrf.mxu0
    %v1763 = vadd.f32 %v1698, %v1762
    %v1764 = vpop.f32.mrf.mxu0
    %v1765 = vadd.f32 %v1698, %v1764
    %1766 = vmatmul.bf16.gmra.mxu0 %v1678
    %v1767 = vpop.f32.mrf.mxu0
    %v1768 = vadd.f32 %v1698, %v1767
    %v1769 = vpop.f32.mrf.mxu0
    %v1770 = vadd.f32 %v1698, %v1769
    %1771 = vmatmul.bf16.gmra.mxu0 %v1679
    %v1772 = vpop.f32.mrf.mxu0
    %v1773 = vadd.f32 %v1698, %v1772
    %v1774 = vpop.f32.mrf.mxu0
    %v1775 = vadd.f32 %v1698, %v1774
    %1776 = vdwg.mxu0
    %v1777 = vxor.u32 %v1758, 2147483648
    %v1778 = vxor.u32 %v1760, 2147483648
    %v1779 = vxor.u32 %v1763, 2147483648
    %v1780 = vxor.u32 %v1765, 2147483648
    %v1781 = vxor.u32 %v1768, 2147483648
    %v1782 = vxor.u32 %v1770, 2147483648
    %v1783 = vxor.u32 %v1773, 2147483648
    %v1784 = vxor.u32 %v1775, 2147483648
    %v1785 = vmul.f32 %v1777, 1.442695
    %v1786 = vpow.pop %v1785
    %v1787 = vmul.f32 %v1778, 1.442695
    %v1788 = vpow.pop %v1787
    %v1789 = vmul.f32 %v1779, 1.442695
    %v1790 = vpow.pop %v1789
    %v1791 = vmul.f32 %v1780, 1.442695
    %v1792 = vpow.pop %v1791
    %v1793 = vmul.f32 %v1781, 1.442695
    %v1794 = vpow.pop %v1793
    %v1795 = vmul.f32 %v1782, 1.442695
    %v1796 = vpow.pop %v1795
    %v1797 = vmul.f32 %v1783, 1.442695
    %v1798 = vpow.pop %v1797
    %v1799 = vmul.f32 %v1784, 1.442695
    %v1800 = vpow.pop %v1799
    %v1801 = vadd.f32 %v1786, 1.0
    %v1802 = vadd.f32 %v1788, 1.0
    %v1803 = vadd.f32 %v1790, 1.0
    %v1804 = vadd.f32 %v1792, 1.0
    %v1805 = vadd.f32 %v1794, 1.0
    %v1806 = vadd.f32 %v1796, 1.0
    %v1807 = vadd.f32 %v1798, 1.0
    %v1808 = vadd.f32 %v1800, 1.0
    %v1809 = vrcp.pop %v1801
    %v1810 = vmul.f32 %v1801, %v1809
    %v1811 = vsub.f32 1.0, %v1810
    %v1812 = vmul.f32 %v1809, %v1811
    %v1813 = vadd.f32 %v1809, %v1812
    %vm1814 = vweird.f32 %v1801
    %vm1815 = vweird.f32 %v1809
    %vm1816 = vmor %vm1814, %vm1815
    %v1817 = vsel %vm1816, %v1809, %v1813
    %v1818 = vand.u32 2147483647, %v1801
    %vm1819 = vcmp.eq.f32.partialorder %v1818, 8.507059e+37
    %v1820 = vand.u32 %v1801, 2147483648
    %v1821 = vor.u32 1.1754944e-38, %v1820
    %v1822 = vsel %vm1819, %v1821, %v1817
    %v1823 = vmul.f32 1.0, %v1822
    %v1824 = vrcp.pop %v1802
    %v1825 = vmul.f32 %v1802, %v1824
    %v1826 = vsub.f32 1.0, %v1825
    %v1827 = vmul.f32 %v1824, %v1826
    %v1828 = vadd.f32 %v1824, %v1827
    %vm1829 = vweird.f32 %v1802
    %vm1830 = vweird.f32 %v1824
    %vm1831 = vmor %vm1829, %vm1830
    %v1832 = vsel %vm1831, %v1824, %v1828
    %v1833 = vand.u32 2147483647, %v1802
    %vm1834 = vcmp.eq.f32.partialorder %v1833, 8.507059e+37
    %v1835 = vand.u32 %v1802, 2147483648
    %v1836 = vor.u32 1.1754944e-38, %v1835
    %v1837 = vsel %vm1834, %v1836, %v1832
    %v1838 = vmul.f32 1.0, %v1837
    %v1839 = vrcp.pop %v1803
    %v1840 = vmul.f32 %v1803, %v1839
    %v1841 = vsub.f32 1.0, %v1840
    %v1842 = vmul.f32 %v1839, %v1841
    %v1843 = vadd.f32 %v1839, %v1842
    %vm1844 = vweird.f32 %v1803
    %vm1845 = vweird.f32 %v1839
    %vm1846 = vmor %vm1844, %vm1845
    %v1847 = vsel %vm1846, %v1839, %v1843
    %v1848 = vand.u32 2147483647, %v1803
    %vm1849 = vcmp.eq.f32.partialorder %v1848, 8.507059e+37
    %v1850 = vand.u32 %v1803, 2147483648
    %v1851 = vor.u32 1.1754944e-38, %v1850
    %v1852 = vsel %vm1849, %v1851, %v1847
    %v1853 = vmul.f32 1.0, %v1852
    %v1854 = vrcp.pop %v1804
    %v1855 = vmul.f32 %v1804, %v1854
    %v1856 = vsub.f32 1.0, %v1855
    %v1857 = vmul.f32 %v1854, %v1856
    %v1858 = vadd.f32 %v1854, %v1857
    %vm1859 = vweird.f32 %v1804
    %vm1860 = vweird.f32 %v1854
    %vm1861 = vmor %vm1859, %vm1860
    %v1862 = vsel %vm1861, %v1854, %v1858
    %v1863 = vand.u32 2147483647, %v1804
    %vm1864 = vcmp.eq.f32.partialorder %v1863, 8.507059e+37
    %v1865 = vand.u32 %v1804, 2147483648
    %v1866 = vor.u32 1.1754944e-38, %v1865
    %v1867 = vsel %vm1864, %v1866, %v1862
    %v1868 = vmul.f32 1.0, %v1867
    %v1869 = vrcp.pop %v1805
    %v1870 = vmul.f32 %v1805, %v1869
    %v1871 = vsub.f32 1.0, %v1870
    %v1872 = vmul.f32 %v1869, %v1871
    %v1873 = vadd.f32 %v1869, %v1872
    %vm1874 = vweird.f32 %v1805
    %vm1875 = vweird.f32 %v1869
    %vm1876 = vmor %vm1874, %vm1875
    %v1877 = vsel %vm1876, %v1869, %v1873
    %v1878 = vand.u32 2147483647, %v1805
    %vm1879 = vcmp.eq.f32.partialorder %v1878, 8.507059e+37
    %v1880 = vand.u32 %v1805, 2147483648
    %v1881 = vor.u32 1.1754944e-38, %v1880
    %v1882 = vsel %vm1879, %v1881, %v1877
    %v1883 = vmul.f32 1.0, %v1882
    %v1884 = vrcp.pop %v1806
    %v1885 = vmul.f32 %v1806, %v1884
    %v1886 = vsub.f32 1.0, %v1885
    %v1887 = vmul.f32 %v1884, %v1886
    %v1888 = vadd.f32 %v1884, %v1887
    %vm1889 = vweird.f32 %v1806
    %vm1890 = vweird.f32 %v1884
    %vm1891 = vmor %vm1889, %vm1890
    %v1892 = vsel %vm1891, %v1884, %v1888
    %v1893 = vand.u32 2147483647, %v1806
    %vm1894 = vcmp.eq.f32.partialorder %v1893, 8.507059e+37
    %v1895 = vand.u32 %v1806, 2147483648
    %v1896 = vor.u32 1.1754944e-38, %v1895
    %v1897 = vsel %vm1894, %v1896, %v1892
    %v1898 = vmul.f32 1.0, %v1897
    %v1899 = vrcp.pop %v1807
    %v1900 = vmul.f32 %v1807, %v1899
    %v1901 = vsub.f32 1.0, %v1900
    %v1902 = vmul.f32 %v1899, %v1901
    %v1903 = vadd.f32 %v1899, %v1902
    %vm1904 = vweird.f32 %v1807
    %vm1905 = vweird.f32 %v1899
    %vm1906 = vmor %vm1904, %vm1905
    %v1907 = vsel %vm1906, %v1899, %v1903
    %v1908 = vand.u32 2147483647, %v1807
    %vm1909 = vcmp.eq.f32.partialorder %v1908, 8.507059e+37
    %v1910 = vand.u32 %v1807, 2147483648
    %v1911 = vor.u32 1.1754944e-38, %v1910
    %v1912 = vsel %vm1909, %v1911, %v1907
    %v1913 = vmul.f32 1.0, %v1912
    %v1914 = vrcp.pop %v1808
    %v1915 = vmul.f32 %v1808, %v1914
    %v1916 = vsub.f32 1.0, %v1915
    %v1917 = vmul.f32 %v1914, %v1916
    %v1918 = vadd.f32 %v1914, %v1917
    %vm1919 = vweird.f32 %v1808
    %vm1920 = vweird.f32 %v1914
    %vm1921 = vmor %vm1919, %vm1920
    %v1922 = vsel %vm1921, %v1914, %v1918
    %v1923 = vand.u32 2147483647, %v1808
    %vm1924 = vcmp.eq.f32.partialorder %v1923, 8.507059e+37
    %v1925 = vand.u32 %v1808, 2147483648
    %v1926 = vor.u32 1.1754944e-38, %v1925
    %v1927 = vsel %vm1924, %v1926, %v1922
    %v1928 = vmul.f32 1.0, %v1927
    %v1929 = vpack.c.bf16 %v1823, %v1823
    %v1930 = vpack.c.bf16 %v1838, %v1838
    %v1931 = vpack.c.bf16 %v1853, %v1853
    %v1932 = vpack.c.bf16 %v1868, %v1868
    %v1933 = vpack.c.bf16 %v1883, %v1883
    %v1934 = vpack.c.bf16 %v1898, %v1898
    %v1935 = vpack.c.bf16 %v1913, %v1913
    %v1936 = vpack.c.bf16 %v1928, %v1928
    %1937 = vst [vmem:[#allocation11] sm:$0xf] %v1929
    %1938 = vst [vmem:[#allocation11 + $0x4] sm:$0xf] %v1930
    %1939 = vst [vmem:[#allocation11 + $0x8] sm:$0xf] %v1931
    %1940 = vst [vmem:[#allocation11 + $0xc] sm:$0xf] %v1932
    %1941 = vst [vmem:[#allocation11 + $0x10] sm:$0xf] %v1933
    %1942 = vst [vmem:[#allocation11 + $0x14] sm:$0xf] %v1934
    %1943 = vst [vmem:[#allocation11 + $0x18] sm:$0xf] %v1935
    %1944 = vst [vmem:[#allocation11 + $0x1c] sm:$0xf] %v1936
    // Predicated region
    $region50: #{tpu_custom_call.1} parent=1 // pred_check
      _
    $region51: #{tpu_custom_call.1} parent=1 // pred_check_branch
      %1946 = sbr.rel (0) target = $region53
    $region52: #{tpu_custom_call.1} parent=1 // pred_region
      %1948 = vsyncadd [#allocation4], 0
      %s1949 = sshll.u32 [#allocation11], 4
      %s1950 = int_to_ptr.vmem [resolvable:$true] %s1949
      %s1951 = sshll.u32 %s7, 4
      %s1952 = int_to_ptr.hbm [resolvable:$true] %s1951
      %1957 = dma.vmem_to_hbm [thread:$0]  %s1950, 512, %s1952, [#allocation4], 64, 64, 4
    $region53: #{tpu_custom_call.1} parent=1 // pred_fallthru
      _
    // Predicated region
    $region54: #{tpu_custom_call.1} parent=1 // pred_check
      _
    $region55: #{tpu_custom_call.1} parent=1 // pred_check_branch
      %1959 = sbr.rel (0) target = $region57
    $region56: #{tpu_custom_call.1} parent=1 // pred_region
      %1961 = dma.done [#allocation4], 512
    $region57: #{tpu_custom_call.1} parent=1 // pred_fallthru
      _
    %1962 = vsyncpa [#allocation3], 1
    %1963 = vsyncpa [#allocation6], 1
    %1964 = vsyncpa [#allocation9], 1
    %1965 = vsyncpa [#allocation4], 1

</llo_original>
